<compile_context>
chip_gen: v7x
topology: tpu7x:2x2x1
jax: 0.10.0
libtpu: 0.0.40
codegen_flags: <defaults>
</compile_context>

<pallas_src>
import functools

import jax
import jax.numpy as jnp
from jax.experimental import pallas as pl
from jax.experimental.pallas import tpu as pltpu

BN_EPS = 1e-5

# Tile targets: real module has im_dim = 256*256*3 = 196608 = 32768*6 = 8192*24.
_TK_TARGET = 32768   # W1 tile (32768, 128) bf16 = 8 MiB, x2 buffers = 16 MiB
_TN_TARGET = 8192    # Wf tile (1024, 8192) bf16 = 16 MiB, x2 buffers = 32 MiB


def _round_up(x, m):
    return ((x + m - 1) // m) * m


def _choose_tile(dim, target):
    """Multiple-of-128 tile <= target; the dimension gets padded to a multiple."""
    return max(128, min(target, _round_up(dim, 128)))


def _vmem_limit_bytes():
    """Generation-aware VMEM request with headroom (never full physical VMEM)."""
    try:
        cap = pltpu.get_tpu_info().vmem_capacity_bytes
    except Exception:
        cap = 64 * 1024 * 1024          # conservative (v7x-sized) fallback
    # Leave >=16 MiB headroom for Mosaic internal scratch; cap at 96 MiB.
    return int(min(max(cap - 16 * 1024 * 1024, 32 * 1024 * 1024),
                   96 * 1024 * 1024))


# ---------------------------------------------------------------------------
# In-kernel helpers
# ---------------------------------------------------------------------------
def _bn_relu(y, gamma, beta):
    """BatchNorm1d (training stats, biased variance over batch) + ReLU."""
    n = y.shape[0]
    mean = jnp.sum(y, axis=0, keepdims=True) * (1.0 / n)
    diff = y - mean
    var = jnp.sum(diff * diff, axis=0, keepdims=True) * (1.0 / n)
    y_hat = diff * jax.lax.rsqrt(var + BN_EPS)
    return jnp.maximum(y_hat * gamma + beta, 0.0)


# ---------------------------------------------------------------------------
# Kernels
# ---------------------------------------------------------------------------
def gen_stack_kernel(x_ref, w1_ref, b1_ref, g1_ref, be1_ref,
                     w2_ref, b2_ref, g2_ref, be2_ref,
                     w3_ref, b3_ref, g3_ref, be3_ref,
                     w4_ref, b4_ref, g4_ref, be4_ref,
                     o_ref, acc_ref):
    """Generator blocks 1-4 fused; grid axis = K tiles of the first Linear."""
    k = pl.program_id(0)

    @pl.when(k == 0)
    def _():
        acc_ref[...] = jnp.zeros_like(acc_ref)

    # Native bf16 x bf16 MXU dot, f32 accumulation (no f32 weight copies).
    acc_ref[...] += jnp.dot(x_ref[...], w1_ref[...],
                            preferred_element_type=jnp.float32)

    @pl.when(k == pl.num_programs(0) - 1)
    def _():
        def block(h, w_ref, b_ref, g_ref, be_ref):
            y = jnp.dot(h.astype(jnp.bfloat16), w_ref[...],
                        preferred_element_type=jnp.float32) + b_ref[...]
            return _bn_relu(y, g_ref[...], be_ref[...])

        h = _bn_relu(acc_ref[...] + b1_ref[...], g1_ref[...], be1_ref[...])
        h = block(h, w2_ref, b2_ref, g2_ref, be2_ref)
        h = block(h, w3_ref, b3_ref, g3_ref, be3_ref)
        h = block(h, w4_ref, b4_ref, g4_ref, be4_ref)
        o_ref[...] = h.astype(o_ref.dtype)


def final_sigmoid_kernel(x_ref, wf_ref, bf_ref, o_ref):
    """Final Linear + exact Sigmoid; grid axis = lane-dense output-N tiles."""
    y = jnp.dot(x_ref[...], wf_ref[...],
                preferred_element_type=jnp.float32) + bf_ref[...]
    o_ref[...] = 1.0 / (1.0 + jnp.exp(-y))   # exact sigmoid (exp on the EUP)


# ---------------------------------------------------------------------------
# pallas_call wrappers
# ---------------------------------------------------------------------------
def run_gen_stack(x, blocks, tk):
    n, im_dim = x.shape
    (w1, b1, g1, be1), (w2, b2, g2, be2), (w3, b3, g3, be3), (w4, b4, g4, be4) = blocks
    h1, h2, h3, h4 = w1.shape[1], w2.shape[1], w3.shape[1], w4.shape[1]

    # Pad K to a tile multiple (zero rows/cols contribute nothing to the dot).
    k_pad = _round_up(im_dim, tk)
    if k_pad != im_dim:
        x = jnp.pad(x, ((0, 0), (0, k_pad - im_dim)))
        w1 = jnp.pad(w1, ((0, k_pad - im_dim), (0, 0)))
    nk = k_pad // tk

    def resident(d0, d1):
        # Small, fetched-once operands (constant index_map). Default buffering
        # kept for robustness; VMEM headroom is ample at these tile sizes.
        return pl.BlockSpec((d0, d1), lambda k: (0, 0))

    flops = 2 * n * (k_pad * h1 + h1 * h2 + h2 * h3 + h3 * h4)
    bytes_accessed = int(
        x.size * x.dtype.itemsize + w1.size * w1.dtype.itemsize
        + sum(a.size * a.dtype.itemsize
              for blk in ((w2, b2, g2, be2), (w3, b3, g3, be3), (w4, b4, g4, be4))
              for a in blk)
        + (b1.size + g1.size + be1.size) * 4
        + n * h4 * 2)
    cost = pl.CostEstimate(flops=flops,
                           transcendentals=h1 + h2 + h3 + h4,   # per-feature rsqrt
                           bytes_accessed=bytes_accessed)

    # NOTE: on v7x the single "arbitrary" K axis runs on one TensorCore; kernel 1
    # is only ~11% of the total HBM bytes, so the 2-core K split is not done here.
    return pl.pallas_call(
        gen_stack_kernel,
        out_shape=jax.ShapeDtypeStruct((n, h4), jnp.bfloat16),
        grid=(nk,),
        in_specs=[
            pl.BlockSpec((n, tk), lambda k: (0, k)),     # x  : bf16 K tiles
            pl.BlockSpec((tk, h1), lambda k: (k, 0)),    # W1 : bf16 K tiles
            resident(1, h1), resident(1, h1), resident(1, h1),
            resident(h1, h2), resident(1, h2), resident(1, h2), resident(1, h2),
            resident(h2, h3), resident(1, h3), resident(1, h3), resident(1, h3),
            resident(h3, h4), resident(1, h4), resident(1, h4), resident(1, h4),
        ],
        out_specs=pl.BlockSpec((n, h4), lambda k: (0, 0)),
        scratch_shapes=[pltpu.VMEM((n, h1), jnp.float32)],
        compiler_params=pltpu.CompilerParams(
            dimension_semantics=("arbitrary",),          # K reduction axis
            vmem_limit_bytes=_vmem_limit_bytes()),
        cost_estimate=cost,
    )(x, w1, b1, g1, be1, w2, b2, g2, be2, w3, b3, g3, be3, w4, b4, g4, be4)


def run_final(x, wf, bf, tn):
    n, h4 = x.shape
    im_dim = wf.shape[1]

    # Pad the output dimension to a tile multiple; slice after the call.
    n_pad = _round_up(im_dim, tn)
    if n_pad != im_dim:
        wf = jnp.pad(wf, ((0, 0), (0, n_pad - im_dim)))
        bf = jnp.pad(bf, ((0, 0), (0, n_pad - im_dim)))
    nn = n_pad // tn

    cost = pl.CostEstimate(
        flops=2 * n * h4 * n_pad,
        transcendentals=n * n_pad,
        bytes_accessed=int(x.size * x.dtype.itemsize
                           + wf.size * wf.dtype.itemsize
                           + bf.size * 4 + n * n_pad * 4))

    out = pl.pallas_call(
        final_sigmoid_kernel,
        out_shape=jax.ShapeDtypeStruct((n, n_pad), jnp.float32),
        grid=(nn,),
        in_specs=[
            pl.BlockSpec((n, h4), lambda j: (0, 0)),     # bf16 activations resident
            pl.BlockSpec((h4, tn), lambda j: (0, j)),    # Wf: bf16 output-N tiles
            pl.BlockSpec((1, tn), lambda j: (0, j)),
        ],
        out_specs=pl.BlockSpec((n, tn), lambda j: (0, j)),
        compiler_params=pltpu.CompilerParams(
            dimension_semantics=("parallel",),           # megacore-shard on v7x
            vmem_limit_bytes=_vmem_limit_bytes()),
        cost_estimate=cost,
    )(x, wf, bf)
    return out[:, :im_dim] if n_pad != im_dim else out


@functools.partial(jax.jit, static_argnames=("tk", "tn"))
def generator_forward(params, image, tk=None, tn=None):
    im_dim = image.shape[1]
    if tk is None:
        tk = _choose_tile(im_dim, _TK_TARGET)
    if tn is None:
        tn = _choose_tile(im_dim, _TN_TARGET)
    x = image.astype(jnp.bfloat16)              # halve kernel-1 activation bytes
    h = run_gen_stack(x, params["blocks"], tk)
    wf, bf = params["final"]
    return run_final(h, wf, bf, tn)


# ---------------------------------------------------------------------------
# Parameter construction (weights stored in bf16, fed natively to the MXU)
# ---------------------------------------------------------------------------
def init_linear(key, d_in, d_out):
    kw, kb = jax.random.split(key)
    bound = 1.0 / jnp.sqrt(jnp.float32(d_in))   # PyTorch-style uniform bound
    w = jax.random.uniform(kw, (d_in, d_out), jnp.float32, -bound, bound)
    b = jax.random.uniform(kb, (1, d_out), jnp.float32, -bound, bound)
    return w.astype(jnp.bfloat16), b


def init_generator_params(key, im_dim, hidden_dim):
    dims = [im_dim, hidden_dim, hidden_dim * 2, hidden_dim * 4, hidden_dim * 8]
    params = {"blocks": [], "final": None}
    keys = jax.random.split(key, 5)
    for i in range(4):
        w, b = init_linear(keys[i], dims[i], dims[i + 1])
        gamma = jnp.ones((1, dims[i + 1]), jnp.float32)   # BatchNorm1d defaults
        beta = jnp.zeros((1, dims[i + 1]), jnp.float32)
        params["blocks"].append((w, b, gamma, beta))
    params["final"] = init_linear(keys[4], dims[4], im_dim)
    # TODO(synk): nn.BatchNorm1d running-stat buffer updates (training-time side
    # effect) are not modeled; they do not affect the forward output here.
    return params


# ---------------------------------------------------------------------------
# Pure-JAX reference with identical bf16-weight / bf16-activation arithmetic
# ---------------------------------------------------------------------------
def generator_ref(params, image):
    x = image.astype(jnp.bfloat16)
    for (w, b, gamma, beta) in params["blocks"]:
        y = jnp.dot(x, w, preferred_element_type=jnp.float32) + b
        n = y.shape[0]
        mean = jnp.sum(y, axis=0, keepdims=True) * (1.0 / n)
        diff = y - mean
        var = jnp.sum(diff * diff, axis=0, keepdims=True) * (1.0 / n)
        y = diff * jax.lax.rsqrt(var + BN_EPS)
        x = jnp.maximum(y * gamma + beta, 0.0).astype(jnp.bfloat16)
    wf, bf = params["final"]
    z = jnp.dot(x, wf, preferred_element_type=jnp.float32) + bf
    return 1.0 / (1.0 + jnp.exp(-z))


if __name__ == "__main__":
    # Small, module-consistent shapes (real module: im_dim=256*256*3, hidden=128).
    batch = 8
    im_dim = 512
    hidden_dim = 32

    key = jax.random.PRNGKey(0)
    k_params, k_x = jax.random.split(key)

    params = init_generator_params(k_params, im_dim, hidden_dim)
    image = jax.random.normal(k_x, (batch, im_dim), jnp.float32)

    # tk/tn forced to 128 so the demo exercises the multi-step K accumulation
    # and output-N tiling code paths (grid=(4,) each) used at real module sizes.
    out = generator_forward(params, image, tk=128, tn=128)
    out = jax.block_until_ready(out)

    ref = generator_ref(params, image)
    assert out.shape == (batch, im_dim), out.shape
    err = float(jnp.max(jnp.abs(out - ref)))
    # Kernel and reference use identical bf16 weights/activations and an exact
    # sigmoid; residual difference comes only from K-tiled f32 accumulation
    # order and exp/rsqrt implementation details.
    assert jnp.allclose(out, ref, atol=2e-3, rtol=2e-3), err

    print("KERNEL_OK")
</pallas_src>

<mosaic_0001>
module attributes {stable_mosaic.version = 11 : i64} {
  func.func @final_sigmoid_kernel(%arg0: i32, %arg1: memref<8x256xbf16, #tpu.memory_space<vmem>>, %arg2: memref<256x128xbf16, #tpu.memory_space<vmem>>, %arg3: memref<1x128xf32, #tpu.memory_space<vmem>>, %arg4: memref<8x128xf32, #tpu.memory_space<vmem>>) attributes {dimension_semantics = [#tpu.dimension_semantics<parallel>], iteration_bounds = array<i64: 4>, scalar_prefetch = 0 : i64, scratch_operands = 0 : i64, tpu.core_type = #tpu.core_type<tc>, window_params = [{pipeline_mode = #tpu.pipeline_mode<synchronous>, transform_indices = @transform_0, window_bounds = array<i64: 8, 256>}, {transform_indices = @transform_1, window_bounds = array<i64: 256, 128>}, {transform_indices = @transform_2, window_bounds = array<i64: 1, 128>}, {transform_indices = @transform_3, window_bounds = array<i64: 8, 128>}]} {
    %c0 = arith.constant 0 : index
    %c0_0 = arith.constant 0 : index
    %0 = vector.load %arg1[%c0, %c0_0] : memref<8x256xbf16, #tpu.memory_space<vmem>>, vector<8x256xbf16>
    %c0_1 = arith.constant 0 : index
    %c0_2 = arith.constant 0 : index
    %1 = vector.load %arg2[%c0_1, %c0_2] : memref<256x128xbf16, #tpu.memory_space<vmem>>, vector<256x128xbf16>
    %cst = arith.constant dense<0.000000e+00> : vector<8x128xf32>
    %2 = tpu.matmul %0, %1, %cst {dimension_numbers = #tpu.dot_dimension_numbers<[1], [0], [0], [1], [0, 0, 1, 1], [], []>} : vector<8x256xbf16>, vector<256x128xbf16>, vector<8x128xf32> -> vector<8x128xf32>
    %c0_3 = arith.constant 0 : index
    %c0_4 = arith.constant 0 : index
    %3 = vector.load %arg3[%c0_3, %c0_4] : memref<1x128xf32, #tpu.memory_space<vmem>>, vector<1x128xf32>
    %4 = vector.broadcast %3 : vector<1x128xf32> to vector<8x128xf32>
    %5 = arith.addf %2, %4 : vector<8x128xf32>
    %cst_5 = arith.constant 0.000000e+00 : f32
    %6 = vector.broadcast %cst_5 : f32 to vector<8x128xf32>
    %7 = arith.subf %6, %5 : vector<8x128xf32>
    %8 = math.exp %7 : vector<8x128xf32>
    %cst_6 = arith.constant 1.000000e+00 : f32
    %9 = vector.broadcast %cst_6 : f32 to vector<8x128xf32>
    %10 = arith.addf %9, %8 : vector<8x128xf32>
    %cst_7 = arith.constant 1.000000e+00 : f32
    %11 = vector.broadcast %cst_7 : f32 to vector<8x128xf32>
    %12 = arith.divf %11, %10 : vector<8x128xf32>
    %c0_8 = arith.constant 0 : index
    %c0_9 = arith.constant 0 : index
    %13 = vector.load %arg4[%c0_8, %c0_9] : memref<8x128xf32, #tpu.memory_space<vmem>>, vector<8x128xf32>
    tpu.vector_store %arg4[%c0_8, %c0_9], %12 {strides = array<i32>} : memref<8x128xf32, #tpu.memory_space<vmem>>, vector<8x128xf32>,
    return
  }
  func.func @transform_0(%arg0: i32) -> (i32, i32) {
    %c0_i32 = arith.constant 0 : i32
    %c0_i32_0 = arith.constant 0 : i32
    %c0_i32_1 = arith.constant 0 : i32
    return %c0_i32, %c0_i32_0 : i32, i32
  }
  func.func @transform_1(%arg0: i32) -> (i32, i32) {
    %c0_i32 = arith.constant 0 : i32
    %c0_i32_0 = arith.constant 0 : i32
    return %c0_i32, %arg0 : i32, i32
  }
  func.func @transform_2(%arg0: i32) -> (i32, i32) {
    %c0_i32 = arith.constant 0 : i32
    %c0_i32_0 = arith.constant 0 : i32
    return %c0_i32, %arg0 : i32, i32
  }
  func.func @transform_3(%arg0: i32) -> (i32, i32) {
    %c0_i32 = arith.constant 0 : i32
    %c0_i32_0 = arith.constant 0 : i32
    return %c0_i32, %arg0 : i32, i32
  }
}

module attributes {stable_mosaic.version = 11 : i64} {
  func.func @gen_stack_kernel(%arg0: i32, %arg1: memref<8x128xbf16, #tpu.memory_space<vmem>>, %arg2: memref<128x32xbf16, #tpu.memory_space<vmem>>, %arg3: memref<1x32xf32, #tpu.memory_space<vmem>>, %arg4: memref<1x32xf32, #tpu.memory_space<vmem>>, %arg5: memref<1x32xf32, #tpu.memory_space<vmem>>, %arg6: memref<32x64xbf16, #tpu.memory_space<vmem>>, %arg7: memref<1x64xf32, #tpu.memory_space<vmem>>, %arg8: memref<1x64xf32, #tpu.memory_space<vmem>>, %arg9: memref<1x64xf32, #tpu.memory_space<vmem>>, %arg10: memref<64x128xbf16, #tpu.memory_space<vmem>>, %arg11: memref<1x128xf32, #tpu.memory_space<vmem>>, %arg12: memref<1x128xf32, #tpu.memory_space<vmem>>, %arg13: memref<1x128xf32, #tpu.memory_space<vmem>>, %arg14: memref<128x256xbf16, #tpu.memory_space<vmem>>, %arg15: memref<1x256xf32, #tpu.memory_space<vmem>>, %arg16: memref<1x256xf32, #tpu.memory_space<vmem>>, %arg17: memref<1x256xf32, #tpu.memory_space<vmem>>, %arg18: memref<8x256xbf16, #tpu.memory_space<vmem>>, %arg19: memref<8x32xf32, #tpu.memory_space<vmem>>) attributes {dimension_semantics = [#tpu.dimension_semantics<arbitrary>], iteration_bounds = array<i64: 4>, scalar_prefetch = 0 : i64, scratch_operands = 1 : i64, tpu.core_type = #tpu.core_type<tc>, window_params = [{transform_indices = @transform_0, window_bounds = array<i64: 8, 128>}, {transform_indices = @transform_1, window_bounds = array<i64: 128, 32>}, {pipeline_mode = #tpu.pipeline_mode<synchronous>, transform_indices = @transform_2, window_bounds = array<i64: 1, 32>}, {pipeline_mode = #tpu.pipeline_mode<synchronous>, transform_indices = @transform_3, window_bounds = array<i64: 1, 32>}, {pipeline_mode = #tpu.pipeline_mode<synchronous>, transform_indices = @transform_4, window_bounds = array<i64: 1, 32>}, {pipeline_mode = #tpu.pipeline_mode<synchronous>, transform_indices = @transform_5, window_bounds = array<i64: 32, 64>}, {pipeline_mode = #tpu.pipeline_mode<synchronous>, transform_indices = @transform_6, window_bounds = array<i64: 1, 64>}, {pipeline_mode = #tpu.pipeline_mode<synchronous>, transform_indices = @transform_7, window_bounds = array<i64: 1, 64>}, {pipeline_mode = #tpu.pipeline_mode<synchronous>, transform_indices = @transform_8, window_bounds = array<i64: 1, 64>}, {pipeline_mode = #tpu.pipeline_mode<synchronous>, transform_indices = @transform_9, window_bounds = array<i64: 64, 128>}, {pipeline_mode = #tpu.pipeline_mode<synchronous>, transform_indices = @transform_10, window_bounds = array<i64: 1, 128>}, {pipeline_mode = #tpu.pipeline_mode<synchronous>, transform_indices = @transform_11, window_bounds = array<i64: 1, 128>}, {pipeline_mode = #tpu.pipeline_mode<synchronous>, transform_indices = @transform_12, window_bounds = array<i64: 1, 128>}, {pipeline_mode = #tpu.pipeline_mode<synchronous>, transform_indices = @transform_13, window_bounds = array<i64: 128, 256>}, {pipeline_mode = #tpu.pipeline_mode<synchronous>, transform_indices = @transform_14, window_bounds = array<i64: 1, 256>}, {pipeline_mode = #tpu.pipeline_mode<synchronous>, transform_indices = @transform_15, window_bounds = array<i64: 1, 256>}, {pipeline_mode = #tpu.pipeline_mode<synchronous>, transform_indices = @transform_16, window_bounds = array<i64: 1, 256>}, {pipeline_mode = #tpu.pipeline_mode<synchronous>, transform_indices = @transform_17, window_bounds = array<i64: 8, 256>}]} {
    %c0_i32 = arith.constant 0 : i32
    %0 = arith.cmpi eq, %arg0, %c0_i32 : i32
    %1 = arith.extui %0 : i1 to i32
    %c0_i32_0 = arith.constant 0 : i32
    %2 = arith.cmpi ne, %1, %c0_i32_0 : i32
    scf.if %2 {
      %cst_9 = arith.constant 0.000000e+00 : f32
      %12 = vector.broadcast %cst_9 : f32 to vector<8x32xf32>
      %c0_10 = arith.constant 0 : index
      %c0_11 = arith.constant 0 : index
      %13 = vector.load %arg19[%c0_10, %c0_11] : memref<8x32xf32, #tpu.memory_space<vmem>>, vector<8x32xf32>
      tpu.vector_store %arg19[%c0_10, %c0_11], %12 {strides = array<i32>} : memref<8x32xf32, #tpu.memory_space<vmem>>, vector<8x32xf32>,
    } else {
    }
    %c0 = arith.constant 0 : index
    %c0_1 = arith.constant 0 : index
    %3 = vector.load %arg19[%c0, %c0_1] : memref<8x32xf32, #tpu.memory_space<vmem>>, vector<8x32xf32>
    %c0_2 = arith.constant 0 : index
    %c0_3 = arith.constant 0 : index
    %4 = vector.load %arg1[%c0_2, %c0_3] : memref<8x128xbf16, #tpu.memory_space<vmem>>, vector<8x128xbf16>
    %c0_4 = arith.constant 0 : index
    %c0_5 = arith.constant 0 : index
    %5 = vector.load %arg2[%c0_4, %c0_5] : memref<128x32xbf16, #tpu.memory_space<vmem>>, vector<128x32xbf16>
    %cst = arith.constant dense<0.000000e+00> : vector<8x32xf32>
    %6 = tpu.matmul %4, %5, %cst {dimension_numbers = #tpu.dot_dimension_numbers<[1], [0], [0], [1], [0, 0, 1, 1], [], []>} : vector<8x128xbf16>, vector<128x32xbf16>, vector<8x32xf32> -> vector<8x32xf32>
    %7 = arith.addf %3, %6 : vector<8x32xf32>
    %c0_6 = arith.constant 0 : index
    %c0_7 = arith.constant 0 : index
    %8 = vector.load %arg19[%c0_6, %c0_7] : memref<8x32xf32, #tpu.memory_space<vmem>>, vector<8x32xf32>
    tpu.vector_store %arg19[%c0_6, %c0_7], %7 {strides = array<i32>} : memref<8x32xf32, #tpu.memory_space<vmem>>, vector<8x32xf32>,
    %c3_i32 = arith.constant 3 : i32
    %9 = arith.cmpi eq, %arg0, %c3_i32 : i32
    %10 = arith.extui %9 : i1 to i32
    %c0_i32_8 = arith.constant 0 : i32
    %11 = arith.cmpi ne, %10, %c0_i32_8 : i32
    scf.if %11 {
      %c0_9 = arith.constant 0 : index
      %c0_10 = arith.constant 0 : index
      %12 = vector.load %arg19[%c0_9, %c0_10] : memref<8x32xf32, #tpu.memory_space<vmem>>, vector<8x32xf32>
      %c0_11 = arith.constant 0 : index
      %c0_12 = arith.constant 0 : index
      %13 = vector.load %arg3[%c0_11, %c0_12] : memref<1x32xf32, #tpu.memory_space<vmem>>, vector<1x32xf32>
      %14 = vector.broadcast %13 : vector<1x32xf32> to vector<8x32xf32>
      %15 = arith.addf %12, %14 : vector<8x32xf32>
      %c0_13 = arith.constant 0 : index
      %c0_14 = arith.constant 0 : index
      %16 = vector.load %arg4[%c0_13, %c0_14] : memref<1x32xf32, #tpu.memory_space<vmem>>, vector<1x32xf32>
      %c0_15 = arith.constant 0 : index
      %c0_16 = arith.constant 0 : index
      %17 = vector.load %arg5[%c0_15, %c0_16] : memref<1x32xf32, #tpu.memory_space<vmem>>, vector<1x32xf32>
      %cst_17 = arith.constant dense<0.000000e+00> : vector<32xf32>
      %18 = vector.multi_reduction <add>, %15, %cst_17 [0] : vector<8x32xf32> to vector<32xf32>
      %19 = vector.shape_cast %18 : vector<32xf32> to vector<1x32xf32>
      %cst_18 = arith.constant 1.250000e-01 : f32
      %20 = vector.broadcast %cst_18 : f32 to vector<1x32xf32>
      %21 = arith.mulf %19, %20 : vector<1x32xf32>
      %22 = vector.broadcast %21 : vector<1x32xf32> to vector<8x32xf32>
      %23 = arith.subf %15, %22 : vector<8x32xf32>
      %24 = arith.mulf %23, %23 : vector<8x32xf32>
      %cst_19 = arith.constant dense<0.000000e+00> : vector<32xf32>
      %25 = vector.multi_reduction <add>, %24, %cst_19 [0] : vector<8x32xf32> to vector<32xf32>
      %26 = vector.shape_cast %25 : vector<32xf32> to vector<1x32xf32>
      %cst_20 = arith.constant 1.250000e-01 : f32
      %27 = vector.broadcast %cst_20 : f32 to vector<1x32xf32>
      %28 = arith.mulf %26, %27 : vector<1x32xf32>
      %cst_21 = arith.constant 9.99999974E-6 : f32
      %29 = vector.broadcast %cst_21 : f32 to vector<1x32xf32>
      %30 = arith.addf %28, %29 : vector<1x32xf32>
      %31 = math.rsqrt %30 : vector<1x32xf32>
      %32 = vector.broadcast %31 : vector<1x32xf32> to vector<8x32xf32>
      %33 = arith.mulf %23, %32 : vector<8x32xf32>
      %34 = vector.broadcast %16 : vector<1x32xf32> to vector<8x32xf32>
      %35 = arith.mulf %33, %34 : vector<8x32xf32>
      %36 = vector.broadcast %17 : vector<1x32xf32> to vector<8x32xf32>
      %37 = arith.addf %35, %36 : vector<8x32xf32>
      %cst_22 = arith.constant 0.000000e+00 : f32
      %38 = vector.broadcast %cst_22 : f32 to vector<8x32xf32>
      %39 = arith.maximumf %37, %38 : vector<8x32xf32>
      %40 = arith.truncf %39 : vector<8x32xf32> to vector<8x32xbf16>
      %c0_23 = arith.constant 0 : index
      %c0_24 = arith.constant 0 : index
      %41 = vector.load %arg6[%c0_23, %c0_24] : memref<32x64xbf16, #tpu.memory_space<vmem>>, vector<32x64xbf16>
      %cst_25 = arith.constant dense<0.000000e+00> : vector<8x64xf32>
      %42 = tpu.matmul %40, %41, %cst_25 {dimension_numbers = #tpu.dot_dimension_numbers<[1], [0], [0], [1], [0, 0, 1, 1], [], []>} : vector<8x32xbf16>, vector<32x64xbf16>, vector<8x64xf32> -> vector<8x64xf32>
      %c0_26 = arith.constant 0 : index
      %c0_27 = arith.constant 0 : index
      %43 = vector.load %arg7[%c0_26, %c0_27] : memref<1x64xf32, #tpu.memory_space<vmem>>, vector<1x64xf32>
      %44 = vector.broadcast %43 : vector<1x64xf32> to vector<8x64xf32>
      %45 = arith.addf %42, %44 : vector<8x64xf32>
      %c0_28 = arith.constant 0 : index
      %c0_29 = arith.constant 0 : index
      %46 = vector.load %arg8[%c0_28, %c0_29] : memref<1x64xf32, #tpu.memory_space<vmem>>, vector<1x64xf32>
      %c0_30 = arith.constant 0 : index
      %c0_31 = arith.constant 0 : index
      %47 = vector.load %arg9[%c0_30, %c0_31] : memref<1x64xf32, #tpu.memory_space<vmem>>, vector<1x64xf32>
      %cst_32 = arith.constant dense<0.000000e+00> : vector<64xf32>
      %48 = vector.multi_reduction <add>, %45, %cst_32 [0] : vector<8x64xf32> to vector<64xf32>
      %49 = vector.shape_cast %48 : vector<64xf32> to vector<1x64xf32>
      %cst_33 = arith.constant 1.250000e-01 : f32
      %50 = vector.broadcast %cst_33 : f32 to vector<1x64xf32>
      %51 = arith.mulf %49, %50 : vector<1x64xf32>
      %52 = vector.broadcast %51 : vector<1x64xf32> to vector<8x64xf32>
      %53 = arith.subf %45, %52 : vector<8x64xf32>
      %54 = arith.mulf %53, %53 : vector<8x64xf32>
      %cst_34 = arith.constant dense<0.000000e+00> : vector<64xf32>
      %55 = vector.multi_reduction <add>, %54, %cst_34 [0] : vector<8x64xf32> to vector<64xf32>
      %56 = vector.shape_cast %55 : vector<64xf32> to vector<1x64xf32>
      %cst_35 = arith.constant 1.250000e-01 : f32
      %57 = vector.broadcast %cst_35 : f32 to vector<1x64xf32>
      %58 = arith.mulf %56, %57 : vector<1x64xf32>
      %cst_36 = arith.constant 9.99999974E-6 : f32
      %59 = vector.broadcast %cst_36 : f32 to vector<1x64xf32>
      %60 = arith.addf %58, %59 : vector<1x64xf32>
      %61 = math.rsqrt %60 : vector<1x64xf32>
      %62 = vector.broadcast %61 : vector<1x64xf32> to vector<8x64xf32>
      %63 = arith.mulf %53, %62 : vector<8x64xf32>
      %64 = vector.broadcast %46 : vector<1x64xf32> to vector<8x64xf32>
      %65 = arith.mulf %63, %64 : vector<8x64xf32>
      %66 = vector.broadcast %47 : vector<1x64xf32> to vector<8x64xf32>
      %67 = arith.addf %65, %66 : vector<8x64xf32>
      %cst_37 = arith.constant 0.000000e+00 : f32
      %68 = vector.broadcast %cst_37 : f32 to vector<8x64xf32>
      %69 = arith.maximumf %67, %68 : vector<8x64xf32>
      %70 = arith.truncf %69 : vector<8x64xf32> to vector<8x64xbf16>
      %c0_38 = arith.constant 0 : index
      %c0_39 = arith.constant 0 : index
      %71 = vector.load %arg10[%c0_38, %c0_39] : memref<64x128xbf16, #tpu.memory_space<vmem>>, vector<64x128xbf16>
      %cst_40 = arith.constant dense<0.000000e+00> : vector<8x128xf32>
      %72 = tpu.matmul %70, %71, %cst_40 {dimension_numbers = #tpu.dot_dimension_numbers<[1], [0], [0], [1], [0, 0, 1, 1], [], []>} : vector<8x64xbf16>, vector<64x128xbf16>, vector<8x128xf32> -> vector<8x128xf32>
      %c0_41 = arith.constant 0 : index
      %c0_42 = arith.constant 0 : index
      %73 = vector.load %arg11[%c0_41, %c0_42] : memref<1x128xf32, #tpu.memory_space<vmem>>, vector<1x128xf32>
      %74 = vector.broadcast %73 : vector<1x128xf32> to vector<8x128xf32>
      %75 = arith.addf %72, %74 : vector<8x128xf32>
      %c0_43 = arith.constant 0 : index
      %c0_44 = arith.constant 0 : index
      %76 = vector.load %arg12[%c0_43, %c0_44] : memref<1x128xf32, #tpu.memory_space<vmem>>, vector<1x128xf32>
      %c0_45 = arith.constant 0 : index
      %c0_46 = arith.constant 0 : index
      %77 = vector.load %arg13[%c0_45, %c0_46] : memref<1x128xf32, #tpu.memory_space<vmem>>, vector<1x128xf32>
      %cst_47 = arith.constant dense<0.000000e+00> : vector<128xf32>
      %78 = vector.multi_reduction <add>, %75, %cst_47 [0] : vector<8x128xf32> to vector<128xf32>
      %79 = vector.shape_cast %78 : vector<128xf32> to vector<1x128xf32>
      %cst_48 = arith.constant 1.250000e-01 : f32
      %80 = vector.broadcast %cst_48 : f32 to vector<1x128xf32>
      %81 = arith.mulf %79, %80 : vector<1x128xf32>
      %82 = vector.broadcast %81 : vector<1x128xf32> to vector<8x128xf32>
      %83 = arith.subf %75, %82 : vector<8x128xf32>
      %84 = arith.mulf %83, %83 : vector<8x128xf32>
      %cst_49 = arith.constant dense<0.000000e+00> : vector<128xf32>
      %85 = vector.multi_reduction <add>, %84, %cst_49 [0] : vector<8x128xf32> to vector<128xf32>
      %86 = vector.shape_cast %85 : vector<128xf32> to vector<1x128xf32>
      %cst_50 = arith.constant 1.250000e-01 : f32
      %87 = vector.broadcast %cst_50 : f32 to vector<1x128xf32>
      %88 = arith.mulf %86, %87 : vector<1x128xf32>
      %cst_51 = arith.constant 9.99999974E-6 : f32
      %89 = vector.broadcast %cst_51 : f32 to vector<1x128xf32>
      %90 = arith.addf %88, %89 : vector<1x128xf32>
      %91 = math.rsqrt %90 : vector<1x128xf32>
      %92 = vector.broadcast %91 : vector<1x128xf32> to vector<8x128xf32>
      %93 = arith.mulf %83, %92 : vector<8x128xf32>
      %94 = vector.broadcast %76 : vector<1x128xf32> to vector<8x128xf32>
      %95 = arith.mulf %93, %94 : vector<8x128xf32>
      %96 = vector.broadcast %77 : vector<1x128xf32> to vector<8x128xf32>
      %97 = arith.addf %95, %96 : vector<8x128xf32>
      %cst_52 = arith.constant 0.000000e+00 : f32
      %98 = vector.broadcast %cst_52 : f32 to vector<8x128xf32>
      %99 = arith.maximumf %97, %98 : vector<8x128xf32>
      %100 = arith.truncf %99 : vector<8x128xf32> to vector<8x128xbf16>
      %c0_53 = arith.constant 0 : index
      %c0_54 = arith.constant 0 : index
      %101 = vector.load %arg14[%c0_53, %c0_54] : memref<128x256xbf16, #tpu.memory_space<vmem>>, vector<128x256xbf16>
      %cst_55 = arith.constant dense<0.000000e+00> : vector<8x256xf32>
      %102 = tpu.matmul %100, %101, %cst_55 {dimension_numbers = #tpu.dot_dimension_numbers<[1], [0], [0], [1], [0, 0, 1, 1], [], []>} : vector<8x128xbf16>, vector<128x256xbf16>, vector<8x256xf32> -> vector<8x256xf32>
      %c0_56 = arith.constant 0 : index
      %c0_57 = arith.constant 0 : index
      %103 = vector.load %arg15[%c0_56, %c0_57] : memref<1x256xf32, #tpu.memory_space<vmem>>, vector<1x256xf32>
      %104 = vector.broadcast %103 : vector<1x256xf32> to vector<8x256xf32>
      %105 = arith.addf %102, %104 : vector<8x256xf32>
      %c0_58 = arith.constant 0 : index
      %c0_59 = arith.constant 0 : index
      %106 = vector.load %arg16[%c0_58, %c0_59] : memref<1x256xf32, #tpu.memory_space<vmem>>, vector<1x256xf32>
      %c0_60 = arith.constant 0 : index
      %c0_61 = arith.constant 0 : index
      %107 = vector.load %arg17[%c0_60, %c0_61] : memref<1x256xf32, #tpu.memory_space<vmem>>, vector<1x256xf32>
      %cst_62 = arith.constant dense<0.000000e+00> : vector<256xf32>
      %108 = vector.multi_reduction <add>, %105, %cst_62 [0] : vector<8x256xf32> to vector<256xf32>
      %109 = vector.shape_cast %108 : vector<256xf32> to vector<1x256xf32>
      %cst_63 = arith.constant 1.250000e-01 : f32
      %110 = vector.broadcast %cst_63 : f32 to vector<1x256xf32>
      %111 = arith.mulf %109, %110 : vector<1x256xf32>
      %112 = vector.broadcast %111 : vector<1x256xf32> to vector<8x256xf32>
      %113 = arith.subf %105, %112 : vector<8x256xf32>
      %114 = arith.mulf %113, %113 : vector<8x256xf32>
      %cst_64 = arith.constant dense<0.000000e+00> : vector<256xf32>
      %115 = vector.multi_reduction <add>, %114, %cst_64 [0] : vector<8x256xf32> to vector<256xf32>
      %116 = vector.shape_cast %115 : vector<256xf32> to vector<1x256xf32>
      %cst_65 = arith.constant 1.250000e-01 : f32
      %117 = vector.broadcast %cst_65 : f32 to vector<1x256xf32>
      %118 = arith.mulf %116, %117 : vector<1x256xf32>
      %cst_66 = arith.constant 9.99999974E-6 : f32
      %119 = vector.broadcast %cst_66 : f32 to vector<1x256xf32>
      %120 = arith.addf %118, %119 : vector<1x256xf32>
      %121 = math.rsqrt %120 : vector<1x256xf32>
      %122 = vector.broadcast %121 : vector<1x256xf32> to vector<8x256xf32>
      %123 = arith.mulf %113, %122 : vector<8x256xf32>
      %124 = vector.broadcast %106 : vector<1x256xf32> to vector<8x256xf32>
      %125 = arith.mulf %123, %124 : vector<8x256xf32>
      %126 = vector.broadcast %107 : vector<1x256xf32> to vector<8x256xf32>
      %127 = arith.addf %125, %126 : vector<8x256xf32>
      %cst_67 = arith.constant 0.000000e+00 : f32
      %128 = vector.broadcast %cst_67 : f32 to vector<8x256xf32>
      %129 = arith.maximumf %127, %128 : vector<8x256xf32>
      %130 = arith.truncf %129 : vector<8x256xf32> to vector<8x256xbf16>
      %c0_68 = arith.constant 0 : index
      %c0_69 = arith.constant 0 : index
      %131 = vector.load %arg18[%c0_68, %c0_69] : memref<8x256xbf16, #tpu.memory_space<vmem>>, vector<8x256xbf16>
      tpu.vector_store %arg18[%c0_68, %c0_69], %130 {strides = array<i32>} : memref<8x256xbf16, #tpu.memory_space<vmem>>, vector<8x256xbf16>,
    } else {
    }
    return
  }
  func.func @transform_0(%arg0: i32) -> (i32, i32) {
    %c0_i32 = arith.constant 0 : i32
    %c0_i32_0 = arith.constant 0 : i32
    return %c0_i32, %arg0 : i32, i32
  }
  func.func @transform_1(%arg0: i32) -> (i32, i32) {
    %c0_i32 = arith.constant 0 : i32
    %c0_i32_0 = arith.constant 0 : i32
    return %arg0, %c0_i32 : i32, i32
  }
  func.func @transform_2(%arg0: i32) -> (i32, i32) {
    %c0_i32 = arith.constant 0 : i32
    %c0_i32_0 = arith.constant 0 : i32
    %c0_i32_1 = arith.constant 0 : i32
    return %c0_i32, %c0_i32_0 : i32, i32
  }
  func.func @transform_3(%arg0: i32) -> (i32, i32) {
    %c0_i32 = arith.constant 0 : i32
    %c0_i32_0 = arith.constant 0 : i32
    %c0_i32_1 = arith.constant 0 : i32
    return %c0_i32, %c0_i32_0 : i32, i32
  }
  func.func @transform_4(%arg0: i32) -> (i32, i32) {
    %c0_i32 = arith.constant 0 : i32
    %c0_i32_0 = arith.constant 0 : i32
    %c0_i32_1 = arith.constant 0 : i32
    return %c0_i32, %c0_i32_0 : i32, i32
  }
  func.func @transform_5(%arg0: i32) -> (i32, i32) {
    %c0_i32 = arith.constant 0 : i32
    %c0_i32_0 = arith.constant 0 : i32
    %c0_i32_1 = arith.constant 0 : i32
    return %c0_i32, %c0_i32_0 : i32, i32
  }
  func.func @transform_6(%arg0: i32) -> (i32, i32) {
    %c0_i32 = arith.constant 0 : i32
    %c0_i32_0 = arith.constant 0 : i32
    %c0_i32_1 = arith.constant 0 : i32
    return %c0_i32, %c0_i32_0 : i32, i32
  }
  func.func @transform_7(%arg0: i32) -> (i32, i32) {
    %c0_i32 = arith.constant 0 : i32
    %c0_i32_0 = arith.constant 0 : i32
    %c0_i32_1 = arith.constant 0 : i32
    return %c0_i32, %c0_i32_0 : i32, i32
  }
  func.func @transform_8(%arg0: i32) -> (i32, i32) {
    %c0_i32 = arith.constant 0 : i32
    %c0_i32_0 = arith.constant 0 : i32
    %c0_i32_1 = arith.constant 0 : i32
    return %c0_i32, %c0_i32_0 : i32, i32
  }
  func.func @transform_9(%arg0: i32) -> (i32, i32) {
    %c0_i32 = arith.constant 0 : i32
    %c0_i32_0 = arith.constant 0 : i32
    %c0_i32_1 = arith.constant 0 : i32
    return %c0_i32, %c0_i32_0 : i32, i32
  }
  func.func @transform_10(%arg0: i32) -> (i32, i32) {
    %c0_i32 = arith.constant 0 : i32
    %c0_i32_0 = arith.constant 0 : i32
    %c0_i32_1 = arith.constant 0 : i32
    return %c0_i32, %c0_i32_0 : i32, i32
  }
  func.func @transform_11(%arg0: i32) -> (i32, i32) {
    %c0_i32 = arith.constant 0 : i32
    %c0_i32_0 = arith.constant 0 : i32
    %c0_i32_1 = arith.constant 0 : i32
    return %c0_i32, %c0_i32_0 : i32, i32
  }
  func.func @transform_12(%arg0: i32) -> (i32, i32) {
    %c0_i32 = arith.constant 0 : i32
    %c0_i32_0 = arith.constant 0 : i32
    %c0_i32_1 = arith.constant 0 : i32
    return %c0_i32, %c0_i32_0 : i32, i32
  }
  func.func @transform_13(%arg0: i32) -> (i32, i32) {
    %c0_i32 = arith.constant 0 : i32
    %c0_i32_0 = arith.constant 0 : i32
    %c0_i32_1 = arith.constant 0 : i32
    return %c0_i32, %c0_i32_0 : i32, i32
  }
  func.func @transform_14(%arg0: i32) -> (i32, i32) {
    %c0_i32 = arith.constant 0 : i32
    %c0_i32_0 = arith.constant 0 : i32
    %c0_i32_1 = arith.constant 0 : i32
    return %c0_i32, %c0_i32_0 : i32, i32
  }
  func.func @transform_15(%arg0: i32) -> (i32, i32) {
    %c0_i32 = arith.constant 0 : i32
    %c0_i32_0 = arith.constant 0 : i32
    %c0_i32_1 = arith.constant 0 : i32
    return %c0_i32, %c0_i32_0 : i32, i32
  }
  func.func @transform_16(%arg0: i32) -> (i32, i32) {
    %c0_i32 = arith.constant 0 : i32
    %c0_i32_0 = arith.constant 0 : i32
    %c0_i32_1 = arith.constant 0 : i32
    return %c0_i32, %c0_i32_0 : i32, i32
  }
  func.func @transform_17(%arg0: i32) -> (i32, i32) {
    %c0_i32 = arith.constant 0 : i32
    %c0_i32_0 = arith.constant 0 : i32
    %c0_i32_1 = arith.constant 0 : i32
    return %c0_i32, %c0_i32_0 : i32, i32
  }
}

</mosaic_0001>

<llo_original>
// kernel: generator_forward.3
$region0: #{generator_forward.3}
  #allocation0 [shape = 'u32[]', space=smem, size = 0x4, offset = 0x4, fixed_abs, tag = 'smem constant byte address 0x4 - core index']
  #allocation1 [shape = 'u32[144,128]{1,0:T(1,128)}', space=vmem, size = 0x12000, scoped, tag = 'internal scratch']
  %s0 = inlined_call_operand.vmem [shape: bf16[8,256], index: 0, kind: input, shape index: {}]
  %s1 = inlined_call_operand.vmem [shape: bf16[256,512], index: 1, kind: input, shape index: {}]
  %s2 = inlined_call_operand.vmem [shape: f32[1,512], index: 2, kind: input, shape index: {}]
  %s3 = inlined_call_operand.hbm [shape: f32[8,512], index: 3, kind: output, shape index: {}]
  %s4 = sld [smem:[#allocation0]]
  $region86: #{generator_forward.3} parent=0
    _
  %s6 = ssub.s32 1, %s4
  %s7 = scalar_select 0, %s6, %s4
  $region1: #{generator_forward.3} parent=0
    #allocation2 [shape = 'u8[131072]{0}', space=vmem, size = 0x20000, scoped, tag = 'input window, operand 1']
    #allocation3 [shape = 'u8[8192]{0}', space=vmem, size = 0x2000, scoped, tag = 'output window, operand 0']
    #allocation4 [shape = 's32[2]{0}', space=sflag, size = 0x8, scoped, tag = 'scoped memory for generator_forward.3']
    %8 = vsyncpa [#allocation4], 0
    %s9 = scalar_lea.sflag [#allocation4], 1
    %10 = vsyncpa %s9, 0
    loop: start=0, step=1, limit=6
    $region2: #{generator_forward.3} parent=1 // loop_pre_header
      _
    $region3: #{generator_forward.3} parent=1 // loop_header
      %s12 = sphi 0, %s16
      %p13 = scmp.ge.s32.totalorder %s12, 6
      %s20 = sphi 0, %s20
      %s22 = sphi 0, %s20
      %s23 = sphi 0, %s22
      %s37 = sphi 0, %s23
      %s43 = sphi 0, %s45
      %s46 = sphi 0, %s43
      %s47 = sphi 0, %s46
      %s63 = sphi 0, %s47
      %s69 = sphi 0, %s71
      %s72 = sphi 0, %s69
      %s73 = sphi 0, %s72
      %s89 = sphi 0, %s73
      %s95 = sphi 0, %s97
      %s98 = sphi 0, %s95
      %s99 = sphi 0, %s98
      %s115 = sphi 0, %s99
    $region4: #{generator_forward.3} parent=1 // loop_header_branch
      %15 = sbr.rel (%p13) target = $region8
    $region5: #{generator_forward.3} parent=1 // loop_body
      %s17 = ssub.s32 %s12, 1
      %s18 = ssub.s32 %s12, 2
      %s19 = sadd.s32 %s12, 1
      %s21 = sadd.s32 %s20, 1
      %p24 = scmp.eq.s32.totalorder %s12, 3
      %p25 = scmp.ne.s32.totalorder %s20, %s22
      %p26 = scmp.eq.s32.totalorder %s12, 0
      %p27 = por %p25, %p26
      %p28 = scmp.ne.s32.totalorder %s20, %s22
      %p29 = scmp.eq.s32.totalorder %s17, 3
      %p30 = por %p28, %p29
      %p31 = scmp.ne.s32.totalorder %s22, %s23
      %p32 = scmp.eq.s32.totalorder %s17, 0
      %p33 = por %p31, %p32
      %p34 = scmp.ne.s32.totalorder %s22, %s23
      %p35 = scmp.eq.s32.totalorder %s18, 3
      %p36 = por %p34, %p35
      %p38 = scmp.ne.s32.totalorder %s23, %s37
      %p39 = scmp.eq.s32.totalorder %s18, 0
      %p40 = por %p38, %p39
      %s41 = ssub.s32 %s12, %s19
      %p42 = scmp.eq.s32.totalorder %s41, 0
      %s44 = sadd.s32 %s43, 1
      %s45 = scalar_select %p42, %s43, %s44
      %p48 = pneg %p42
      %p49 = scmp.eq.s32.totalorder %s12, 3
      %p50 = por %p48, %p49
      %p51 = scmp.ne.s32.totalorder %s43, %s46
      %p52 = scmp.eq.s32.totalorder %s12, 0
      %p53 = por %p51, %p52
      %p54 = scmp.ne.s32.totalorder %s43, %s46
      %p55 = scmp.eq.s32.totalorder %s17, 3
      %p56 = por %p54, %p55
      %p57 = scmp.ne.s32.totalorder %s46, %s47
      %p58 = scmp.eq.s32.totalorder %s17, 0
      %p59 = por %p57, %p58
      %p60 = scmp.ne.s32.totalorder %s46, %s47
      %p61 = scmp.eq.s32.totalorder %s18, 3
      %p62 = por %p60, %p61
      %p64 = scmp.ne.s32.totalorder %s47, %s63
      %p65 = scmp.eq.s32.totalorder %s18, 0
      %p66 = por %p64, %p65
      %s67 = ssub.s32 %s12, %s19
      %p68 = scmp.eq.s32.totalorder %s67, 0
      %s70 = sadd.s32 %s69, 1
      %s71 = scalar_select %p68, %s69, %s70
      %p74 = pneg %p68
      %p75 = scmp.eq.s32.totalorder %s12, 3
      %p76 = por %p74, %p75
      %p77 = scmp.ne.s32.totalorder %s69, %s72
      %p78 = scmp.eq.s32.totalorder %s12, 0
      %p79 = por %p77, %p78
      %p80 = scmp.ne.s32.totalorder %s69, %s72
      %p81 = scmp.eq.s32.totalorder %s17, 3
      %p82 = por %p80, %p81
      %p83 = scmp.ne.s32.totalorder %s72, %s73
      %p84 = scmp.eq.s32.totalorder %s17, 0
      %p85 = por %p83, %p84
      %p86 = scmp.ne.s32.totalorder %s72, %s73
      %p87 = scmp.eq.s32.totalorder %s18, 3
      %p88 = por %p86, %p87
      %p90 = scmp.ne.s32.totalorder %s73, %s89
      %p91 = scmp.eq.s32.totalorder %s18, 0
      %p92 = por %p90, %p91
      %s93 = ssub.s32 %s12, %s19
      %p94 = scmp.eq.s32.totalorder %s93, 0
      %s96 = sadd.s32 %s95, 1
      %s97 = scalar_select %p94, %s95, %s96
      %p100 = pneg %p94
      %p101 = scmp.eq.s32.totalorder %s12, 3
      %p102 = por %p100, %p101
      %p103 = scmp.ne.s32.totalorder %s95, %s98
      %p104 = scmp.eq.s32.totalorder %s12, 0
      %p105 = por %p103, %p104
      %p106 = scmp.ne.s32.totalorder %s95, %s98
      %p107 = scmp.eq.s32.totalorder %s17, 3
      %p108 = por %p106, %p107
      %p109 = scmp.ne.s32.totalorder %s98, %s99
      %p110 = scmp.eq.s32.totalorder %s17, 0
      %p111 = por %p109, %p110
      %p112 = scmp.ne.s32.totalorder %s98, %s99
      %p113 = scmp.eq.s32.totalorder %s18, 3
      %p114 = por %p112, %p113
      %p116 = scmp.ne.s32.totalorder %s99, %s115
      %p117 = scmp.eq.s32.totalorder %s18, 0
      %p118 = por %p116, %p117
      %p119 = scmp.le.s32.totalorder 1, %s12
      %p120 = scmp.lt.s32.totalorder %s12, 5
      %p121 = pnand %p119, %p120
      %p122 = pneg %p121
      // Predicated region
      $region9: #{generator_forward.3} parent=5 // pred_check
        _
      $region10: #{generator_forward.3} parent=5 // pred_check_branch
        %124 = sbr.rel (%p121) target = $region12
      $region11: #{generator_forward.3} parent=5 // pred_region
        %s125 = ssub.s32 %s12, 1
        // Predicated region
        $region13: #{generator_forward.3} parent=11 // pred_check
          %p126 = pneg %p33
        $region14: #{generator_forward.3} parent=11 // pred_check_branch
          %128 = sbr.rel (%p126) target = $region16
        $region15: #{generator_forward.3} parent=11 // pred_region
          _
        $region16: #{generator_forward.3} parent=11 // pred_fallthru
          _
      $region12: #{generator_forward.3} parent=5 // pred_fallthru
        _
      %p129 = scmp.lt.s32.totalorder %s12, 4
      // Predicated region
      $region17: #{generator_forward.3} parent=5 // pred_check
        %p130 = pneg %p129
      $region18: #{generator_forward.3} parent=5 // pred_check_branch
        %132 = sbr.rel (%p130) target = $region20
      $region19: #{generator_forward.3} parent=5 // pred_region
        // Predicated region
        $region21: #{generator_forward.3} parent=19 // pred_check
          %p133 = pneg %p53
        $region22: #{generator_forward.3} parent=19 // pred_check_branch
          %135 = sbr.rel (%p133) target = $region24
        $region23: #{generator_forward.3} parent=19 // pred_region
          %s136 = sand.u32 %s43, 1
          %s137 = sand.u32 %s43, 1
          %s138 = smul.addr %s137, 128
          %s139 = scalar_lea.vmem [#allocation2], %s138
          %s140 = smul.addr %s12, 4
          %s141 = scalar_lea.vmem %s1, %s140
          // Predicated region
          $region25: #{generator_forward.3} parent=23 // pred_check
            _
          $region26: #{generator_forward.3} parent=23 // pred_check_branch
            %143 = sbr.rel (0) target = $region28
          $region27: #{generator_forward.3} parent=23 // pred_region
            // Predicated region
            $region29: #{generator_forward.3} parent=27 // pred_check
              _
            $region30: #{generator_forward.3} parent=27 // pred_check_branch
              %145 = sbr.rel target = $region32
            $region31: #{generator_forward.3} parent=27 // pred_region
              // Predicated region
              $region44: #{generator_forward.3} parent=31 // pred_check
                _
              $region45: #{generator_forward.3} parent=31 // pred_check_branch
                %222 = sbr.rel (0) target = $region47
              $region46: #{generator_forward.3} parent=31 // pred_region
                loop: start=0, step=1, limit=1
                $region48: #{generator_forward.3} parent=46 // loop_pre_header
                  _
                $region49: #{generator_forward.3} parent=46 // loop_header
                  %s224 = sphi 0, %s228
                  %p225 = scmp.ge.s32.totalorder %s224, 1
                  %s229 = sphi %s141, %s141
                  %s230 = sphi %s139, %s139
                $region50: #{generator_forward.3} parent=46 // loop_header_branch
                  %227 = sbr.rel (%p225) target = $region54
                $region51: #{generator_forward.3} parent=46 // loop_body
                  _
                $region52: #{generator_forward.3} parent=46 // loop_footer
                  %s228 = sadd.s32 1, %s224
                $region53: #{generator_forward.3} parent=46 // loop_footer_branch
                  %223 = sbr.rel target = $region49
                $region54: #{generator_forward.3} parent=46 // loop_exit
                  _
                loop: start=0, step=1, limit=1
                $region55: #{generator_forward.3} parent=46 // loop_pre_header
                  _
                $region56: #{generator_forward.3} parent=46 // loop_header
                  %s233 = sphi 0, %s237
                  %p234 = scmp.ge.s32.totalorder %s233, 1
                  %s238 = sphi %s141, %s141
                  %s239 = sphi %s139, %s139
                $region57: #{generator_forward.3} parent=46 // loop_header_branch
                  %236 = sbr.rel (%p234) target = $region61
                $region58: #{generator_forward.3} parent=46 // loop_body
                  %v240 = vld [vmem:[%s238] sm:$0xf]
                  %241 = vst [vmem:[%s239] sm:$0xf] %v240
                  %v242 = vld [vmem:[%s238 + $0x10] sm:$0xf]
                  %243 = vst [vmem:[%s239 + $0x4] sm:$0xf] %v242
                  %v244 = vld [vmem:[%s238 + $0x20] sm:$0xf]
                  %245 = vst [vmem:[%s239 + $0x8] sm:$0xf] %v244
                  %v246 = vld [vmem:[%s238 + $0x30] sm:$0xf]
                  %247 = vst [vmem:[%s239 + $0xc] sm:$0xf] %v246
                  %v248 = vld [vmem:[%s238 + $0x40] sm:$0xf]
                  %249 = vst [vmem:[%s239 + $0x10] sm:$0xf] %v248
                  %v250 = vld [vmem:[%s238 + $0x50] sm:$0xf]
                  %251 = vst [vmem:[%s239 + $0x14] sm:$0xf] %v250
                  %v252 = vld [vmem:[%s238 + $0x60] sm:$0xf]
                  %253 = vst [vmem:[%s239 + $0x18] sm:$0xf] %v252
                  %v254 = vld [vmem:[%s238 + $0x70] sm:$0xf]
                  %255 = vst [vmem:[%s239 + $0x1c] sm:$0xf] %v254
                  %v256 = vld [vmem:[%s238 + $0x80] sm:$0xf]
                  %257 = vst [vmem:[%s239 + $0x20] sm:$0xf] %v256
                  %v258 = vld [vmem:[%s238 + $0x90] sm:$0xf]
                  %259 = vst [vmem:[%s239 + $0x24] sm:$0xf] %v258
                  %v260 = vld [vmem:[%s238 + $0xa0] sm:$0xf]
                  %261 = vst [vmem:[%s239 + $0x28] sm:$0xf] %v260
                  %v262 = vld [vmem:[%s238 + $0xb0] sm:$0xf]
                  %263 = vst [vmem:[%s239 + $0x2c] sm:$0xf] %v262
                  %v264 = vld [vmem:[%s238 + $0xc0] sm:$0xf]
                  %265 = vst [vmem:[%s239 + $0x30] sm:$0xf] %v264
                  %v266 = vld [vmem:[%s238 + $0xd0] sm:$0xf]
                  %267 = vst [vmem:[%s239 + $0x34] sm:$0xf] %v266
                  %v268 = vld [vmem:[%s238 + $0xe0] sm:$0xf]
                  %269 = vst [vmem:[%s239 + $0x38] sm:$0xf] %v268
                  %v270 = vld [vmem:[%s238 + $0xf0] sm:$0xf]
                  %271 = vst [vmem:[%s239 + $0x3c] sm:$0xf] %v270
                  %v272 = vld [vmem:[%s238 + $0x100] sm:$0xf]
                  %273 = vst [vmem:[%s239 + $0x40] sm:$0xf] %v272
                  %v274 = vld [vmem:[%s238 + $0x110] sm:$0xf]
                  %275 = vst [vmem:[%s239 + $0x44] sm:$0xf] %v274
                  %v276 = vld [vmem:[%s238 + $0x120] sm:$0xf]
                  %277 = vst [vmem:[%s239 + $0x48] sm:$0xf] %v276
                  %v278 = vld [vmem:[%s238 + $0x130] sm:$0xf]
                  %279 = vst [vmem:[%s239 + $0x4c] sm:$0xf] %v278
                  %v280 = vld [vmem:[%s238 + $0x140] sm:$0xf]
                  %281 = vst [vmem:[%s239 + $0x50] sm:$0xf] %v280
                  %v282 = vld [vmem:[%s238 + $0x150] sm:$0xf]
                  %283 = vst [vmem:[%s239 + $0x54] sm:$0xf] %v282
                  %v284 = vld [vmem:[%s238 + $0x160] sm:$0xf]
                  %285 = vst [vmem:[%s239 + $0x58] sm:$0xf] %v284
                  %v286 = vld [vmem:[%s238 + $0x170] sm:$0xf]
                  %287 = vst [vmem:[%s239 + $0x5c] sm:$0xf] %v286
                  %v288 = vld [vmem:[%s238 + $0x180] sm:$0xf]
                  %289 = vst [vmem:[%s239 + $0x60] sm:$0xf] %v288
                  %v290 = vld [vmem:[%s238 + $0x190] sm:$0xf]
                  %291 = vst [vmem:[%s239 + $0x64] sm:$0xf] %v290
                  %v292 = vld [vmem:[%s238 + $0x1a0] sm:$0xf]
                  %293 = vst [vmem:[%s239 + $0x68] sm:$0xf] %v292
                  %v294 = vld [vmem:[%s238 + $0x1b0] sm:$0xf]
                  %295 = vst [vmem:[%s239 + $0x6c] sm:$0xf] %v294
                  %v296 = vld [vmem:[%s238 + $0x1c0] sm:$0xf]
                  %297 = vst [vmem:[%s239 + $0x70] sm:$0xf] %v296
                  %v298 = vld [vmem:[%s238 + $0x1d0] sm:$0xf]
                  %299 = vst [vmem:[%s239 + $0x74] sm:$0xf] %v298
                  %v300 = vld [vmem:[%s238 + $0x1e0] sm:$0xf]
                  %301 = vst [vmem:[%s239 + $0x78] sm:$0xf] %v300
                  %v302 = vld [vmem:[%s238 + $0x1f0] sm:$0xf]
                  %303 = vst [vmem:[%s239 + $0x7c] sm:$0xf] %v302
                $region59: #{generator_forward.3} parent=46 // loop_footer
                  %s237 = sadd.s32 1, %s233
                $region60: #{generator_forward.3} parent=46 // loop_footer_branch
                  %232 = sbr.rel target = $region56
                $region61: #{generator_forward.3} parent=46 // loop_exit
                  _
              $region47: #{generator_forward.3} parent=31 // pred_fallthru
                _
            $region32: #{generator_forward.3} parent=27 // pred_fallthru
              _
            // Predicated region
            $region33: #{generator_forward.3} parent=27 // pred_check
              _
            $region34: #{generator_forward.3} parent=27 // pred_check_branch
              %147 = sbr.rel (0) target = $region36
            $region35: #{generator_forward.3} parent=27 // pred_region
              loop: start=0, step=1, limit=1
              $region37: #{generator_forward.3} parent=35 // loop_pre_header
                _
              $region38: #{generator_forward.3} parent=35 // loop_header
                %s150 = sphi 0, %s154
                %p151 = scmp.ge.s32.totalorder %s150, 1
                %s155 = sphi %s141, %s141
                %s156 = sphi %s139, %s139
              $region39: #{generator_forward.3} parent=35 // loop_header_branch
                %153 = sbr.rel (%p151) target = $region43
              $region40: #{generator_forward.3} parent=35 // loop_body
                %v157 = vld [vmem:[%s155] sm:$0xf]
                %158 = vst [vmem:[%s156] sm:$0xf] %v157
                %v159 = vld [vmem:[%s155 + $0x10] sm:$0xf]
                %160 = vst [vmem:[%s156 + $0x4] sm:$0xf] %v159
                %v161 = vld [vmem:[%s155 + $0x20] sm:$0xf]
                %162 = vst [vmem:[%s156 + $0x8] sm:$0xf] %v161
                %v163 = vld [vmem:[%s155 + $0x30] sm:$0xf]
                %164 = vst [vmem:[%s156 + $0xc] sm:$0xf] %v163
                %v165 = vld [vmem:[%s155 + $0x40] sm:$0xf]
                %166 = vst [vmem:[%s156 + $0x10] sm:$0xf] %v165
                %v167 = vld [vmem:[%s155 + $0x50] sm:$0xf]
                %168 = vst [vmem:[%s156 + $0x14] sm:$0xf] %v167
                %v169 = vld [vmem:[%s155 + $0x60] sm:$0xf]
                %170 = vst [vmem:[%s156 + $0x18] sm:$0xf] %v169
                %v171 = vld [vmem:[%s155 + $0x70] sm:$0xf]
                %172 = vst [vmem:[%s156 + $0x1c] sm:$0xf] %v171
                %v173 = vld [vmem:[%s155 + $0x80] sm:$0xf]
                %174 = vst [vmem:[%s156 + $0x20] sm:$0xf] %v173
                %v175 = vld [vmem:[%s155 + $0x90] sm:$0xf]
                %176 = vst [vmem:[%s156 + $0x24] sm:$0xf] %v175
                %v177 = vld [vmem:[%s155 + $0xa0] sm:$0xf]
                %178 = vst [vmem:[%s156 + $0x28] sm:$0xf] %v177
                %v179 = vld [vmem:[%s155 + $0xb0] sm:$0xf]
                %180 = vst [vmem:[%s156 + $0x2c] sm:$0xf] %v179
                %v181 = vld [vmem:[%s155 + $0xc0] sm:$0xf]
                %182 = vst [vmem:[%s156 + $0x30] sm:$0xf] %v181
                %v183 = vld [vmem:[%s155 + $0xd0] sm:$0xf]
                %184 = vst [vmem:[%s156 + $0x34] sm:$0xf] %v183
                %v185 = vld [vmem:[%s155 + $0xe0] sm:$0xf]
                %186 = vst [vmem:[%s156 + $0x38] sm:$0xf] %v185
                %v187 = vld [vmem:[%s155 + $0xf0] sm:$0xf]
                %188 = vst [vmem:[%s156 + $0x3c] sm:$0xf] %v187
                %v189 = vld [vmem:[%s155 + $0x100] sm:$0xf]
                %190 = vst [vmem:[%s156 + $0x40] sm:$0xf] %v189
                %v191 = vld [vmem:[%s155 + $0x110] sm:$0xf]
                %192 = vst [vmem:[%s156 + $0x44] sm:$0xf] %v191
                %v193 = vld [vmem:[%s155 + $0x120] sm:$0xf]
                %194 = vst [vmem:[%s156 + $0x48] sm:$0xf] %v193
                %v195 = vld [vmem:[%s155 + $0x130] sm:$0xf]
                %196 = vst [vmem:[%s156 + $0x4c] sm:$0xf] %v195
                %v197 = vld [vmem:[%s155 + $0x140] sm:$0xf]
                %198 = vst [vmem:[%s156 + $0x50] sm:$0xf] %v197
                %v199 = vld [vmem:[%s155 + $0x150] sm:$0xf]
                %200 = vst [vmem:[%s156 + $0x54] sm:$0xf] %v199
                %v201 = vld [vmem:[%s155 + $0x160] sm:$0xf]
                %202 = vst [vmem:[%s156 + $0x58] sm:$0xf] %v201
                %v203 = vld [vmem:[%s155 + $0x170] sm:$0xf]
                %204 = vst [vmem:[%s156 + $0x5c] sm:$0xf] %v203
                %v205 = vld [vmem:[%s155 + $0x180] sm:$0xf]
                %206 = vst [vmem:[%s156 + $0x60] sm:$0xf] %v205
                %v207 = vld [vmem:[%s155 + $0x190] sm:$0xf]
                %208 = vst [vmem:[%s156 + $0x64] sm:$0xf] %v207
                %v209 = vld [vmem:[%s155 + $0x1a0] sm:$0xf]
                %210 = vst [vmem:[%s156 + $0x68] sm:$0xf] %v209
                %v211 = vld [vmem:[%s155 + $0x1b0] sm:$0xf]
                %212 = vst [vmem:[%s156 + $0x6c] sm:$0xf] %v211
                %v213 = vld [vmem:[%s155 + $0x1c0] sm:$0xf]
                %214 = vst [vmem:[%s156 + $0x70] sm:$0xf] %v213
                %v215 = vld [vmem:[%s155 + $0x1d0] sm:$0xf]
                %216 = vst [vmem:[%s156 + $0x74] sm:$0xf] %v215
                %v217 = vld [vmem:[%s155 + $0x1e0] sm:$0xf]
                %218 = vst [vmem:[%s156 + $0x78] sm:$0xf] %v217
                %v219 = vld [vmem:[%s155 + $0x1f0] sm:$0xf]
                %220 = vst [vmem:[%s156 + $0x7c] sm:$0xf] %v219
              $region41: #{generator_forward.3} parent=35 // loop_footer
                %s154 = sadd.s32 1, %s150
              $region42: #{generator_forward.3} parent=35 // loop_footer_branch
                %149 = sbr.rel target = $region38
              $region43: #{generator_forward.3} parent=35 // loop_exit
                _
            $region36: #{generator_forward.3} parent=27 // pred_fallthru
              _
          $region28: #{generator_forward.3} parent=23 // pred_fallthru
            _
          %304 = vnop
        $region24: #{generator_forward.3} parent=19 // pred_fallthru
          _
        // Predicated region
        $region62: #{generator_forward.3} parent=19 // pred_check
          %p305 = pneg %p79
        $region63: #{generator_forward.3} parent=19 // pred_check_branch
          %307 = sbr.rel (%p305) target = $region65
        $region64: #{generator_forward.3} parent=19 // pred_region
          %p308 = scmp.lt.s32.totalorder %s12, 3
          %s309 = scalar_select %p308, %s12, 3
          %s310 = scalar_lea.vmem %s2, %s309
        $region65: #{generator_forward.3} parent=19 // pred_fallthru
          _
      $region20: #{generator_forward.3} parent=5 // pred_fallthru
        _
      %p311 = scmp.le.s32.totalorder 1, %s12
      %p312 = scmp.lt.s32.totalorder %s12, 5
      %p313 = pnand %p311, %p312
      %p314 = pneg %p313
      // Predicated region
      $region66: #{generator_forward.3} parent=5 // pred_check
        _
      $region67: #{generator_forward.3} parent=5 // pred_check_branch
        %316 = sbr.rel (%p313) target = $region69
      $region68: #{generator_forward.3} parent=5 // pred_region
        %s317 = ssub.s32 %s12, 1
        %s318 = sand.u32 %s46, 1
        %s319 = sand.u32 %s46, 1
        %s320 = smul.addr %s319, 128
        %s321 = scalar_lea.vmem [#allocation2], %s320
        // Predicated region
        $region70: #{generator_forward.3} parent=68 // pred_check
          %p322 = pneg %p59
        $region71: #{generator_forward.3} parent=68 // pred_check_branch
          %324 = sbr.rel (%p322) target = $region73
        $region72: #{generator_forward.3} parent=68 // pred_region
          _
        $region73: #{generator_forward.3} parent=68 // pred_fallthru
          _
        %p325 = pneg %p33
        %p326 = pneg %p30
        %s327 = sand.u32 %s46, 1
        %s328 = sand.u32 %s46, 1
        %s329 = smul.addr %s328, 128
        %s330 = scalar_lea.vmem [#allocation2], %s329
        %p331 = pneg %p59
        %p332 = pneg %p56
        %p333 = scmp.lt.s32.totalorder %s17, 3
        %s334 = scalar_select %p333, %s17, 3
        %s335 = scalar_lea.vmem %s2, %s334
        %p336 = pneg %p85
        %p337 = pneg %p82
        %p338 = pneg %p111
        %p339 = pneg %p108
        %s340 = sand.u32 %s98, 1
        %s341 = scalar_lea.sflag [#allocation4], %s340
        %s342 = sand.u32 %s98, 1
        %s343 = smul.addr %s342, 8
        %s344 = scalar_lea.vmem [#allocation3], %s343
        %p345 = scmp.lt.s32.totalorder %s17, 3
        %s346 = scalar_select %p345, %s17, 3
        %s347 = scalar_lea.vmem %s2, %s346
        %v349 = vld [vmem:[%s0] sm:$0xff]
        %v350 = vld [vmem:[%s321] sm:$0xf]
        %v351 = vld [vmem:[%s321 + $0x4] sm:$0xf]
        %v352 = vld [vmem:[%s321 + $0x8] sm:$0xf]
        %v353 = vld [vmem:[%s321 + $0xc] sm:$0xf]
        %v354 = vld [vmem:[%s321 + $0x10] sm:$0xf]
        %v355 = vld [vmem:[%s321 + $0x14] sm:$0xf]
        %v356 = vld [vmem:[%s321 + $0x18] sm:$0xf]
        %v357 = vld [vmem:[%s321 + $0x1c] sm:$0xf]
        %v358 = vld [vmem:[%s321 + $0x20] sm:$0xf]
        %v359 = vld [vmem:[%s321 + $0x24] sm:$0xf]
        %v360 = vld [vmem:[%s321 + $0x28] sm:$0xf]
        %v361 = vld [vmem:[%s321 + $0x2c] sm:$0xf]
        %v362 = vld [vmem:[%s321 + $0x30] sm:$0xf]
        %v363 = vld [vmem:[%s321 + $0x34] sm:$0xf]
        %v364 = vld [vmem:[%s321 + $0x38] sm:$0xf]
        %v365 = vld [vmem:[%s321 + $0x3c] sm:$0xf]
        %v366 = vld [vmem:[%s321 + $0x40] sm:$0xf]
        %v367 = vld [vmem:[%s321 + $0x44] sm:$0xf]
        %v368 = vld [vmem:[%s321 + $0x48] sm:$0xf]
        %v369 = vld [vmem:[%s321 + $0x4c] sm:$0xf]
        %v370 = vld [vmem:[%s321 + $0x50] sm:$0xf]
        %v371 = vld [vmem:[%s321 + $0x54] sm:$0xf]
        %v372 = vld [vmem:[%s321 + $0x58] sm:$0xf]
        %v373 = vld [vmem:[%s321 + $0x5c] sm:$0xf]
        %v374 = vld [vmem:[%s321 + $0x60] sm:$0xf]
        %v375 = vld [vmem:[%s321 + $0x64] sm:$0xf]
        %v376 = vld [vmem:[%s321 + $0x68] sm:$0xf]
        %v377 = vld [vmem:[%s321 + $0x6c] sm:$0xf]
        %v378 = vld [vmem:[%s321 + $0x70] sm:$0xf]
        %v379 = vld [vmem:[%s321 + $0x74] sm:$0xf]
        %v380 = vld [vmem:[%s321 + $0x78] sm:$0xf]
        %v381 = vld [vmem:[%s321 + $0x7c] sm:$0xf]
        %v382 = vld [vmem:[%s347] sm:$0x1]
        %v384 = vlaneseq
        %v385 = vshrl.u32 %v384, 7
        %v386 = vsub.s32 0, %v385
        %v387 = vrot.slane %v382, %v386
        %v390 = vunpack.c.l.b16 %v349
        %v391 = vunpack.c.h.b16 %v349
        %v392 = vpack.c.b16 %v390, %v390
        %v393 = vpack.c.b16 %v391, %v391
        %v428 = vunpack.c.l.b16 %v350
        %v429 = vunpack.c.l.b16 %v351
        %v430 = vunpack.c.l.b16 %v352
        %v431 = vunpack.c.l.b16 %v353
        %v432 = vunpack.c.l.b16 %v354
        %v433 = vunpack.c.l.b16 %v355
        %v434 = vunpack.c.l.b16 %v356
        %v435 = vunpack.c.l.b16 %v357
        %v436 = vunpack.c.l.b16 %v358
        %v437 = vunpack.c.l.b16 %v359
        %v438 = vunpack.c.l.b16 %v360
        %v439 = vunpack.c.l.b16 %v361
        %v440 = vunpack.c.l.b16 %v362
        %v441 = vunpack.c.l.b16 %v363
        %v442 = vunpack.c.l.b16 %v364
        %v443 = vunpack.c.l.b16 %v365
        %v444 = vunpack.c.l.b16 %v366
        %v445 = vunpack.c.l.b16 %v367
        %v446 = vunpack.c.l.b16 %v368
        %v447 = vunpack.c.l.b16 %v369
        %v448 = vunpack.c.l.b16 %v370
        %v449 = vunpack.c.l.b16 %v371
        %v450 = vunpack.c.l.b16 %v372
        %v451 = vunpack.c.l.b16 %v373
        %v452 = vunpack.c.l.b16 %v374
        %v453 = vunpack.c.l.b16 %v375
        %v454 = vunpack.c.l.b16 %v376
        %v455 = vunpack.c.l.b16 %v377
        %v456 = vunpack.c.l.b16 %v378
        %v457 = vunpack.c.l.b16 %v379
        %v458 = vunpack.c.l.b16 %v380
        %v459 = vunpack.c.l.b16 %v381
        %v460 = vpack.c.b16 %v429, %v428
        %v461 = vpack.c.b16 %v431, %v430
        %v462 = vpack.c.b16 %v433, %v432
        %v463 = vpack.c.b16 %v435, %v434
        %v464 = vpack.c.b16 %v437, %v436
        %v465 = vpack.c.b16 %v439, %v438
        %v466 = vpack.c.b16 %v441, %v440
        %v467 = vpack.c.b16 %v443, %v442
        %v468 = vpack.c.b16 %v445, %v444
        %v469 = vpack.c.b16 %v447, %v446
        %v470 = vpack.c.b16 %v449, %v448
        %v471 = vpack.c.b16 %v451, %v450
        %v472 = vpack.c.b16 %v453, %v452
        %v473 = vpack.c.b16 %v455, %v454
        %v474 = vpack.c.b16 %v457, %v456
        %v475 = vpack.c.b16 %v459, %v458
        %492 = vmatprep.subr.bf16.mxu0 0
        %493 = vmatpush1.bf16.msra.mxu0 %v460
        %494 = vmatprep.subr.bf16.mxu0 0
        %495 = vmatpush1.bf16.msra.mxu0 %v461
        %496 = vmatprep.subr.bf16.mxu0 0
        %497 = vmatpush1.bf16.msra.mxu0 %v462
        %498 = vmatprep.subr.bf16.mxu0 0
        %499 = vmatpush1.bf16.msra.mxu0 %v463
        %500 = vmatprep.subr.bf16.mxu0 0
        %501 = vmatpush1.bf16.msra.mxu0 %v464
        %502 = vmatprep.subr.bf16.mxu0 0
        %503 = vmatpush1.bf16.msra.mxu0 %v465
        %504 = vmatprep.subr.bf16.mxu0 0
        %505 = vmatpush1.bf16.msra.mxu0 %v466
        %506 = vmatprep.subr.bf16.mxu0 0
        %507 = vmatpush1.bf16.msra.mxu0 %v467
        %508 = vmatprep.subr.bf16.mxu0 0
        %509 = vmatpush1.bf16.msra.mxu0 %v468
        %510 = vmatprep.subr.bf16.mxu0 0
        %511 = vmatpush1.bf16.msra.mxu0 %v469
        %512 = vmatprep.subr.bf16.mxu0 0
        %513 = vmatpush1.bf16.msra.mxu0 %v470
        %514 = vmatprep.subr.bf16.mxu0 0
        %515 = vmatpush1.bf16.msra.mxu0 %v471
        %516 = vmatprep.subr.bf16.mxu0 0
        %517 = vmatpush1.bf16.msra.mxu0 %v472
        %518 = vmatprep.subr.bf16.mxu0 0
        %519 = vmatpush1.bf16.msra.mxu0 %v473
        %520 = vmatprep.subr.bf16.mxu0 0
        %521 = vmatpush1.bf16.msra.mxu0 %v474
        %522 = vmatprep.subr.bf16.mxu0 0
        %523 = vmatpush1.bf16.msra.mxu0 %v475
        %524 = vmatprep.mubr.bf16.mxu0 %v393
        %525 = vmatmul.mubr.bf16.gmra.mrb[0].mxu0 %v392
        %v526 = vpop.f32.mrb[0].mxu0
        %v527 = vadd.f32 %v387, %v526
        %v528 = vpop.f32.mrb[0].mxu0
        %v529 = vpop.f32.mrb[0].mxu0
        %v530 = vpop.f32.mrb[0].mxu0
        %531 = vdwg.mxu0
        %v532 = vsub.f32 0.0, %v527
        %v533 = vmul.f32 %v532, 1.442695
        %v534 = vpow.pop %v533
        %v535 = vadd.f32 %v534, 1.0
        %v536 = vrcp.pop %v535
        %v537 = vmul.f32 1.0, %v536
        %538 = vst [vmem:[%s344] sm:$0xff] %v537
        %s539 = sand.u32 %s98, 1
        %s540 = scalar_lea.sflag [#allocation4], %s539
        %s541 = sand.u32 %s98, 1
        %s542 = smul.addr %s541, 8
        %s543 = scalar_lea.vmem [#allocation3], %s542
        // Predicated region
        $region74: #{generator_forward.3} parent=68 // pred_check
          %p544 = pneg %p108
        $region75: #{generator_forward.3} parent=68 // pred_check_branch
          %546 = sbr.rel (%p544) target = $region77
        $region76: #{generator_forward.3} parent=68 // pred_region
          %s548 = ssub.s32 128, 128
          %549 = vsyncadd %s540, %s548
          %s550 = smul.addr %s17, 128
          %s551 = scalar_lea.hbm %s3, %s550
          %s553 = sshll.u32 %s543, 4
          %s554 = int_to_ptr.vmem [resolvable:$true] %s553
          %556 = dma.vmem_to_hbm [thread:$0]  %s554, 128, %s551, %s540
        $region77: #{generator_forward.3} parent=68 // pred_fallthru
          _
      $region69: #{generator_forward.3} parent=5 // pred_fallthru
        _
      %p557 = scmp.le.s32.totalorder 2, %s12
      // Predicated region
      $region78: #{generator_forward.3} parent=5 // pred_check
        %p558 = pneg %p557
      $region79: #{generator_forward.3} parent=5 // pred_check_branch
        %560 = sbr.rel (%p558) target = $region81
      $region80: #{generator_forward.3} parent=5 // pred_region
        %s561 = ssub.s32 %s12, 2
        // Predicated region
        $region82: #{generator_forward.3} parent=80 // pred_check
          %p562 = pneg %p114
        $region83: #{generator_forward.3} parent=80 // pred_check_branch
          %564 = sbr.rel (%p562) target = $region85
        $region84: #{generator_forward.3} parent=80 // pred_region
          %s565 = sand.u32 %s99, 1
          %s566 = scalar_lea.sflag [#allocation4], %s565
          %s567 = sand.u32 %s99, 1
          %s568 = smul.addr %s567, 8
          %s569 = scalar_lea.vmem [#allocation3], %s568
          %570 = dma.done %s566, 128
        $region85: #{generator_forward.3} parent=80 // pred_fallthru
          _
      $region81: #{generator_forward.3} parent=5 // pred_fallthru
        _
    $region6: #{generator_forward.3} parent=1 // loop_footer
      %s16 = sadd.s32 1, %s12
    $region7: #{generator_forward.3} parent=1 // loop_footer_branch
      %11 = sbr.rel target = $region3
    $region8: #{generator_forward.3} parent=1 // loop_exit
      _
    %571 = vsyncpa [#allocation4], 1
    %s572 = scalar_lea.sflag [#allocation4], 1
    %573 = vsyncpa %s572, 1

// kernel: generator_forward.2
$region0: #{generator_forward.2}
  #allocation0 [shape = 'u32[]', space=smem, size = 0x4, offset = 0x4, fixed_abs, tag = 'smem constant byte address 0x4 - core index']
  #allocation1 [shape = 'u32[144,128]{1,0:T(1,128)}', space=vmem, size = 0x12000, scoped, tag = 'internal scratch']
  #allocation2 [shape = 'f32[8,32]{1,0:T(8,128)}', space=vmem, size = 0x1000, scoped, tag = 'scratch operand']
  %s0 = inlined_call_operand.vmem [shape: bf16[8,512], index: 0, kind: input, shape index: {}]
  %s1 = inlined_call_operand.vmem [shape: bf16[512,32], index: 1, kind: input, shape index: {}]
  %s2 = inlined_call_operand.hbm [shape: f32[1,32], index: 2, kind: input, shape index: {}]
  %s3 = inlined_call_operand.hbm [shape: f32[1,32], index: 3, kind: input, shape index: {}]
  %s4 = inlined_call_operand.hbm [shape: f32[1,32], index: 4, kind: input, shape index: {}]
  %s5 = inlined_call_operand.hbm [shape: bf16[32,64], index: 5, kind: input, shape index: {}]
  %s6 = inlined_call_operand.hbm [shape: f32[1,64], index: 6, kind: input, shape index: {}]
  %s7 = inlined_call_operand.hbm [shape: f32[1,64], index: 7, kind: input, shape index: {}]
  %s8 = inlined_call_operand.hbm [shape: f32[1,64], index: 8, kind: input, shape index: {}]
  %s9 = inlined_call_operand.hbm [shape: bf16[64,128], index: 9, kind: input, shape index: {}]
  %s10 = inlined_call_operand.hbm [shape: f32[1,128], index: 10, kind: input, shape index: {}]
  %s11 = inlined_call_operand.hbm [shape: f32[1,128], index: 11, kind: input, shape index: {}]
  %s12 = inlined_call_operand.hbm [shape: f32[1,128], index: 12, kind: input, shape index: {}]
  %s13 = inlined_call_operand.hbm [shape: bf16[128,256], index: 13, kind: input, shape index: {}]
  %s14 = inlined_call_operand.hbm [shape: f32[1,256], index: 14, kind: input, shape index: {}]
  %s15 = inlined_call_operand.hbm [shape: f32[1,256], index: 15, kind: input, shape index: {}]
  %s16 = inlined_call_operand.hbm [shape: f32[1,256], index: 16, kind: input, shape index: {}]
  %s17 = inlined_call_operand.vmem [shape: bf16[8,256], index: 17, kind: output, shape index: {}]
  %s18 = sld [smem:[#allocation0]]
  $region169: #{generator_forward.2} parent=0
    _
  %s20 = ssub.s32 1, %s18
  %s21 = scalar_select 0, %s20, %s18
  $region1: #{generator_forward.2} parent=0
    #allocation3 [shape = 'u8[512]{0}', space=vmem, size = 0x400, scoped, tag = 'input window, operand 2, single buffered']
    #allocation4 [shape = 's32[2]{0}', space=sflag, size = 0x8, scoped, tag = 'scoped memory for generator_forward.2']
    #allocation5 [shape = 'u8[512]{0}', space=vmem, size = 0x400, scoped, tag = 'input window, operand 3, single buffered']
    #allocation6 [shape = 's32[1]{0}', space=sflag, size = 0x4, scoped, tag = 'scoped memory for generator_forward.2']
    #allocation7 [shape = 'u8[512]{0}', space=vmem, size = 0x400, scoped, tag = 'input window, operand 4, single buffered']
    #allocation8 [shape = 'u8[8192]{0}', space=vmem, size = 0x2000, scoped, tag = 'input window, operand 5, single buffered']
    #allocation9 [shape = 's32[1]{0}', space=sflag, size = 0x4, scoped, tag = 'scoped memory for generator_forward.2']
    #allocation10 [shape = 'u8[512]{0}', space=vmem, size = 0x400, scoped, tag = 'input window, operand 6, single buffered']
    #allocation11 [shape = 'u8[512]{0}', space=vmem, size = 0x400, scoped, tag = 'input window, operand 7, single buffered']
    #allocation12 [shape = 's32[1]{0}', space=sflag, size = 0x4, scoped, tag = 'scoped memory for generator_forward.2']
    #allocation13 [shape = 'u8[512]{0}', space=vmem, size = 0x400, scoped, tag = 'input window, operand 8, single buffered']
    #allocation14 [shape = 'u8[16384]{0}', space=vmem, size = 0x4000, scoped, tag = 'input window, operand 9, single buffered']
    #allocation15 [shape = 's32[1]{0}', space=sflag, size = 0x4, scoped, tag = 'scoped memory for generator_forward.2']
    #allocation16 [shape = 'u8[512]{0}', space=vmem, size = 0x400, scoped, tag = 'input window, operand 10, single buffered']
    #allocation17 [shape = 'u8[512]{0}', space=vmem, size = 0x400, scoped, tag = 'input window, operand 11, single buffered']
    #allocation18 [shape = 's32[1]{0}', space=sflag, size = 0x4, scoped, tag = 'scoped memory for generator_forward.2']
    #allocation19 [shape = 'u8[512]{0}', space=vmem, size = 0x400, scoped, tag = 'input window, operand 12, single buffered']
    #allocation20 [shape = 'u8[65536]{0}', space=vmem, size = 0x10000, scoped, tag = 'input window, operand 13, single buffered']
    #allocation21 [shape = 's32[1]{0}', space=sflag, size = 0x4, scoped, tag = 'scoped memory for generator_forward.2']
    #allocation22 [shape = 'u8[1024]{0}', space=vmem, size = 0x400, scoped, tag = 'input window, operand 14, single buffered']
    #allocation23 [shape = 'u8[1024]{0}', space=vmem, size = 0x400, scoped, tag = 'input window, operand 15, single buffered']
    #allocation24 [shape = 's32[1]{0}', space=sflag, size = 0x4, scoped, tag = 'scoped memory for generator_forward.2']
    #allocation25 [shape = 'u8[1024]{0}', space=vmem, size = 0x400, scoped, tag = 'input window, operand 16, single buffered']
    %22 = vsyncpa [#allocation4], 0
    %23 = vsyncpa [#allocation6], 0
    %24 = vsyncpa [#allocation9], 0
    %25 = vsyncpa [#allocation12], 0
    %26 = vsyncpa [#allocation15], 0
    %27 = vsyncpa [#allocation18], 0
    %28 = vsyncpa [#allocation21], 0
    %29 = vsyncpa [#allocation24], 0
    loop: start=0, step=1, limit=6
    $region2: #{generator_forward.2} parent=1 // loop_pre_header
      _
    $region3: #{generator_forward.2} parent=1 // loop_header
      %s31 = sphi 0, %s35
      %p32 = scmp.ge.s32.totalorder %s31, 6
      %s41 = sphi 0, %s43
      %s44 = sphi 0, %s41
      %s45 = sphi 0, %s44
      %s61 = sphi 0, %s45
      %s67 = sphi 0, %s69
      %s70 = sphi 0, %s67
      %s71 = sphi 0, %s70
      %s87 = sphi 0, %s71
      %s91 = sphi 0, %s91
      %s93 = sphi 0, %s91
      %s94 = sphi 0, %s93
      %s108 = sphi 0, %s94
      %s112 = sphi 0, %s112
      %s114 = sphi 0, %s112
      %s115 = sphi 0, %s114
      %s129 = sphi 0, %s115
      %s133 = sphi 0, %s133
      %s135 = sphi 0, %s133
      %s136 = sphi 0, %s135
      %s150 = sphi 0, %s136
      %s154 = sphi 0, %s154
      %s156 = sphi 0, %s154
      %s157 = sphi 0, %s156
      %s171 = sphi 0, %s157
      %s175 = sphi 0, %s175
      %s177 = sphi 0, %s175
      %s178 = sphi 0, %s177
      %s192 = sphi 0, %s178
      %s196 = sphi 0, %s196
      %s198 = sphi 0, %s196
      %s199 = sphi 0, %s198
      %s213 = sphi 0, %s199
      %s217 = sphi 0, %s217
      %s219 = sphi 0, %s217
      %s220 = sphi 0, %s219
      %s234 = sphi 0, %s220
      %s238 = sphi 0, %s238
      %s240 = sphi 0, %s238
      %s241 = sphi 0, %s240
      %s255 = sphi 0, %s241
      %s259 = sphi 0, %s259
      %s261 = sphi 0, %s259
      %s262 = sphi 0, %s261
      %s276 = sphi 0, %s262
      %s280 = sphi 0, %s280
      %s282 = sphi 0, %s280
      %s283 = sphi 0, %s282
      %s297 = sphi 0, %s283
      %s301 = sphi 0, %s301
      %s303 = sphi 0, %s301
      %s304 = sphi 0, %s303
      %s318 = sphi 0, %s304
      %s322 = sphi 0, %s322
      %s324 = sphi 0, %s322
      %s325 = sphi 0, %s324
      %s339 = sphi 0, %s325
      %s343 = sphi 0, %s343
      %s345 = sphi 0, %s343
      %s346 = sphi 0, %s345
      %s360 = sphi 0, %s346
      %s364 = sphi 0, %s364
      %s366 = sphi 0, %s364
      %s367 = sphi 0, %s366
      %s381 = sphi 0, %s367
      %s385 = sphi 0, %s385
      %s387 = sphi 0, %s385
      %s388 = sphi 0, %s387
      %s402 = sphi 0, %s388
      %s406 = sphi 0, %s406
      %s408 = sphi 0, %s406
      %s409 = sphi 0, %s408
      %s423 = sphi 0, %s409
    $region4: #{generator_forward.2} parent=1 // loop_header_branch
      %34 = sbr.rel (%p32) target = $region8
    $region5: #{generator_forward.2} parent=1 // loop_body
      %s36 = ssub.s32 %s31, 1
      %s37 = ssub.s32 %s31, 2
      %s38 = sadd.s32 %s31, 1
      %s39 = ssub.s32 %s31, %s38
      %p40 = scmp.eq.s32.totalorder %s39, 0
      %s42 = sadd.s32 %s41, 1
      %s43 = scalar_select %p40, %s41, %s42
      %p46 = pneg %p40
      %p47 = scmp.eq.s32.totalorder %s31, 3
      %p48 = por %p46, %p47
      %p49 = scmp.ne.s32.totalorder %s41, %s44
      %p50 = scmp.eq.s32.totalorder %s31, 0
      %p51 = por %p49, %p50
      %p52 = scmp.ne.s32.totalorder %s41, %s44
      %p53 = scmp.eq.s32.totalorder %s36, 3
      %p54 = por %p52, %p53
      %p55 = scmp.ne.s32.totalorder %s44, %s45
      %p56 = scmp.eq.s32.totalorder %s36, 0
      %p57 = por %p55, %p56
      %p58 = scmp.ne.s32.totalorder %s44, %s45
      %p59 = scmp.eq.s32.totalorder %s37, 3
      %p60 = por %p58, %p59
      %p62 = scmp.ne.s32.totalorder %s45, %s61
      %p63 = scmp.eq.s32.totalorder %s37, 0
      %p64 = por %p62, %p63
      %s65 = ssub.s32 %s31, %s38
      %p66 = scmp.eq.s32.totalorder %s65, 0
      %s68 = sadd.s32 %s67, 1
      %s69 = scalar_select %p66, %s67, %s68
      %p72 = pneg %p66
      %p73 = scmp.eq.s32.totalorder %s31, 3
      %p74 = por %p72, %p73
      %p75 = scmp.ne.s32.totalorder %s67, %s70
      %p76 = scmp.eq.s32.totalorder %s31, 0
      %p77 = por %p75, %p76
      %p78 = scmp.ne.s32.totalorder %s67, %s70
      %p79 = scmp.eq.s32.totalorder %s36, 3
      %p80 = por %p78, %p79
      %p81 = scmp.ne.s32.totalorder %s70, %s71
      %p82 = scmp.eq.s32.totalorder %s36, 0
      %p83 = por %p81, %p82
      %p84 = scmp.ne.s32.totalorder %s70, %s71
      %p85 = scmp.eq.s32.totalorder %s37, 3
      %p86 = por %p84, %p85
      %p88 = scmp.ne.s32.totalorder %s71, %s87
      %p89 = scmp.eq.s32.totalorder %s37, 0
      %p90 = por %p88, %p89
      %s92 = sadd.s32 %s91, 1
      %p95 = scmp.eq.s32.totalorder %s31, 3
      %p96 = scmp.ne.s32.totalorder %s91, %s93
      %p97 = scmp.eq.s32.totalorder %s31, 0
      %p98 = por %p96, %p97
      %p99 = scmp.ne.s32.totalorder %s91, %s93
      %p100 = scmp.eq.s32.totalorder %s36, 3
      %p101 = por %p99, %p100
      %p102 = scmp.ne.s32.totalorder %s93, %s94
      %p103 = scmp.eq.s32.totalorder %s36, 0
      %p104 = por %p102, %p103
      %p105 = scmp.ne.s32.totalorder %s93, %s94
      %p106 = scmp.eq.s32.totalorder %s37, 3
      %p107 = por %p105, %p106
      %p109 = scmp.ne.s32.totalorder %s94, %s108
      %p110 = scmp.eq.s32.totalorder %s37, 0
      %p111 = por %p109, %p110
      %s113 = sadd.s32 %s112, 1
      %p116 = scmp.eq.s32.totalorder %s31, 3
      %p117 = scmp.ne.s32.totalorder %s112, %s114
      %p118 = scmp.eq.s32.totalorder %s31, 0
      %p119 = por %p117, %p118
      %p120 = scmp.ne.s32.totalorder %s112, %s114
      %p121 = scmp.eq.s32.totalorder %s36, 3
      %p122 = por %p120, %p121
      %p123 = scmp.ne.s32.totalorder %s114, %s115
      %p124 = scmp.eq.s32.totalorder %s36, 0
      %p125 = por %p123, %p124
      %p126 = scmp.ne.s32.totalorder %s114, %s115
      %p127 = scmp.eq.s32.totalorder %s37, 3
      %p128 = por %p126, %p127
      %p130 = scmp.ne.s32.totalorder %s115, %s129
      %p131 = scmp.eq.s32.totalorder %s37, 0
      %p132 = por %p130, %p131
      %s134 = sadd.s32 %s133, 1
      %p137 = scmp.eq.s32.totalorder %s31, 3
      %p138 = scmp.ne.s32.totalorder %s133, %s135
      %p139 = scmp.eq.s32.totalorder %s31, 0
      %p140 = por %p138, %p139
      %p141 = scmp.ne.s32.totalorder %s133, %s135
      %p142 = scmp.eq.s32.totalorder %s36, 3
      %p143 = por %p141, %p142
      %p144 = scmp.ne.s32.totalorder %s135, %s136
      %p145 = scmp.eq.s32.totalorder %s36, 0
      %p146 = por %p144, %p145
      %p147 = scmp.ne.s32.totalorder %s135, %s136
      %p148 = scmp.eq.s32.totalorder %s37, 3
      %p149 = por %p147, %p148
      %p151 = scmp.ne.s32.totalorder %s136, %s150
      %p152 = scmp.eq.s32.totalorder %s37, 0
      %p153 = por %p151, %p152
      %s155 = sadd.s32 %s154, 1
      %p158 = scmp.eq.s32.totalorder %s31, 3
      %p159 = scmp.ne.s32.totalorder %s154, %s156
      %p160 = scmp.eq.s32.totalorder %s31, 0
      %p161 = por %p159, %p160
      %p162 = scmp.ne.s32.totalorder %s154, %s156
      %p163 = scmp.eq.s32.totalorder %s36, 3
      %p164 = por %p162, %p163
      %p165 = scmp.ne.s32.totalorder %s156, %s157
      %p166 = scmp.eq.s32.totalorder %s36, 0
      %p167 = por %p165, %p166
      %p168 = scmp.ne.s32.totalorder %s156, %s157
      %p169 = scmp.eq.s32.totalorder %s37, 3
      %p170 = por %p168, %p169
      %p172 = scmp.ne.s32.totalorder %s157, %s171
      %p173 = scmp.eq.s32.totalorder %s37, 0
      %p174 = por %p172, %p173
      %s176 = sadd.s32 %s175, 1
      %p179 = scmp.eq.s32.totalorder %s31, 3
      %p180 = scmp.ne.s32.totalorder %s175, %s177
      %p181 = scmp.eq.s32.totalorder %s31, 0
      %p182 = por %p180, %p181
      %p183 = scmp.ne.s32.totalorder %s175, %s177
      %p184 = scmp.eq.s32.totalorder %s36, 3
      %p185 = por %p183, %p184
      %p186 = scmp.ne.s32.totalorder %s177, %s178
      %p187 = scmp.eq.s32.totalorder %s36, 0
      %p188 = por %p186, %p187
      %p189 = scmp.ne.s32.totalorder %s177, %s178
      %p190 = scmp.eq.s32.totalorder %s37, 3
      %p191 = por %p189, %p190
      %p193 = scmp.ne.s32.totalorder %s178, %s192
      %p194 = scmp.eq.s32.totalorder %s37, 0
      %p195 = por %p193, %p194
      %s197 = sadd.s32 %s196, 1
      %p200 = scmp.eq.s32.totalorder %s31, 3
      %p201 = scmp.ne.s32.totalorder %s196, %s198
      %p202 = scmp.eq.s32.totalorder %s31, 0
      %p203 = por %p201, %p202
      %p204 = scmp.ne.s32.totalorder %s196, %s198
      %p205 = scmp.eq.s32.totalorder %s36, 3
      %p206 = por %p204, %p205
      %p207 = scmp.ne.s32.totalorder %s198, %s199
      %p208 = scmp.eq.s32.totalorder %s36, 0
      %p209 = por %p207, %p208
      %p210 = scmp.ne.s32.totalorder %s198, %s199
      %p211 = scmp.eq.s32.totalorder %s37, 3
      %p212 = por %p210, %p211
      %p214 = scmp.ne.s32.totalorder %s199, %s213
      %p215 = scmp.eq.s32.totalorder %s37, 0
      %p216 = por %p214, %p215
      %s218 = sadd.s32 %s217, 1
      %p221 = scmp.eq.s32.totalorder %s31, 3
      %p222 = scmp.ne.s32.totalorder %s217, %s219
      %p223 = scmp.eq.s32.totalorder %s31, 0
      %p224 = por %p222, %p223
      %p225 = scmp.ne.s32.totalorder %s217, %s219
      %p226 = scmp.eq.s32.totalorder %s36, 3
      %p227 = por %p225, %p226
      %p228 = scmp.ne.s32.totalorder %s219, %s220
      %p229 = scmp.eq.s32.totalorder %s36, 0
      %p230 = por %p228, %p229
      %p231 = scmp.ne.s32.totalorder %s219, %s220
      %p232 = scmp.eq.s32.totalorder %s37, 3
      %p233 = por %p231, %p232
      %p235 = scmp.ne.s32.totalorder %s220, %s234
      %p236 = scmp.eq.s32.totalorder %s37, 0
      %p237 = por %p235, %p236
      %s239 = sadd.s32 %s238, 1
      %p242 = scmp.eq.s32.totalorder %s31, 3
      %p243 = scmp.ne.s32.totalorder %s238, %s240
      %p244 = scmp.eq.s32.totalorder %s31, 0
      %p245 = por %p243, %p244
      %p246 = scmp.ne.s32.totalorder %s238, %s240
      %p247 = scmp.eq.s32.totalorder %s36, 3
      %p248 = por %p246, %p247
      %p249 = scmp.ne.s32.totalorder %s240, %s241
      %p250 = scmp.eq.s32.totalorder %s36, 0
      %p251 = por %p249, %p250
      %p252 = scmp.ne.s32.totalorder %s240, %s241
      %p253 = scmp.eq.s32.totalorder %s37, 3
      %p254 = por %p252, %p253
      %p256 = scmp.ne.s32.totalorder %s241, %s255
      %p257 = scmp.eq.s32.totalorder %s37, 0
      %p258 = por %p256, %p257
      %s260 = sadd.s32 %s259, 1
      %p263 = scmp.eq.s32.totalorder %s31, 3
      %p264 = scmp.ne.s32.totalorder %s259, %s261
      %p265 = scmp.eq.s32.totalorder %s31, 0
      %p266 = por %p264, %p265
      %p267 = scmp.ne.s32.totalorder %s259, %s261
      %p268 = scmp.eq.s32.totalorder %s36, 3
      %p269 = por %p267, %p268
      %p270 = scmp.ne.s32.totalorder %s261, %s262
      %p271 = scmp.eq.s32.totalorder %s36, 0
      %p272 = por %p270, %p271
      %p273 = scmp.ne.s32.totalorder %s261, %s262
      %p274 = scmp.eq.s32.totalorder %s37, 3
      %p275 = por %p273, %p274
      %p277 = scmp.ne.s32.totalorder %s262, %s276
      %p278 = scmp.eq.s32.totalorder %s37, 0
      %p279 = por %p277, %p278
      %s281 = sadd.s32 %s280, 1
      %p284 = scmp.eq.s32.totalorder %s31, 3
      %p285 = scmp.ne.s32.totalorder %s280, %s282
      %p286 = scmp.eq.s32.totalorder %s31, 0
      %p287 = por %p285, %p286
      %p288 = scmp.ne.s32.totalorder %s280, %s282
      %p289 = scmp.eq.s32.totalorder %s36, 3
      %p290 = por %p288, %p289
      %p291 = scmp.ne.s32.totalorder %s282, %s283
      %p292 = scmp.eq.s32.totalorder %s36, 0
      %p293 = por %p291, %p292
      %p294 = scmp.ne.s32.totalorder %s282, %s283
      %p295 = scmp.eq.s32.totalorder %s37, 3
      %p296 = por %p294, %p295
      %p298 = scmp.ne.s32.totalorder %s283, %s297
      %p299 = scmp.eq.s32.totalorder %s37, 0
      %p300 = por %p298, %p299
      %s302 = sadd.s32 %s301, 1
      %p305 = scmp.eq.s32.totalorder %s31, 3
      %p306 = scmp.ne.s32.totalorder %s301, %s303
      %p307 = scmp.eq.s32.totalorder %s31, 0
      %p308 = por %p306, %p307
      %p309 = scmp.ne.s32.totalorder %s301, %s303
      %p310 = scmp.eq.s32.totalorder %s36, 3
      %p311 = por %p309, %p310
      %p312 = scmp.ne.s32.totalorder %s303, %s304
      %p313 = scmp.eq.s32.totalorder %s36, 0
      %p314 = por %p312, %p313
      %p315 = scmp.ne.s32.totalorder %s303, %s304
      %p316 = scmp.eq.s32.totalorder %s37, 3
      %p317 = por %p315, %p316
      %p319 = scmp.ne.s32.totalorder %s304, %s318
      %p320 = scmp.eq.s32.totalorder %s37, 0
      %p321 = por %p319, %p320
      %s323 = sadd.s32 %s322, 1
      %p326 = scmp.eq.s32.totalorder %s31, 3
      %p327 = scmp.ne.s32.totalorder %s322, %s324
      %p328 = scmp.eq.s32.totalorder %s31, 0
      %p329 = por %p327, %p328
      %p330 = scmp.ne.s32.totalorder %s322, %s324
      %p331 = scmp.eq.s32.totalorder %s36, 3
      %p332 = por %p330, %p331
      %p333 = scmp.ne.s32.totalorder %s324, %s325
      %p334 = scmp.eq.s32.totalorder %s36, 0
      %p335 = por %p333, %p334
      %p336 = scmp.ne.s32.totalorder %s324, %s325
      %p337 = scmp.eq.s32.totalorder %s37, 3
      %p338 = por %p336, %p337
      %p340 = scmp.ne.s32.totalorder %s325, %s339
      %p341 = scmp.eq.s32.totalorder %s37, 0
      %p342 = por %p340, %p341
      %s344 = sadd.s32 %s343, 1
      %p347 = scmp.eq.s32.totalorder %s31, 3
      %p348 = scmp.ne.s32.totalorder %s343, %s345
      %p349 = scmp.eq.s32.totalorder %s31, 0
      %p350 = por %p348, %p349
      %p351 = scmp.ne.s32.totalorder %s343, %s345
      %p352 = scmp.eq.s32.totalorder %s36, 3
      %p353 = por %p351, %p352
      %p354 = scmp.ne.s32.totalorder %s345, %s346
      %p355 = scmp.eq.s32.totalorder %s36, 0
      %p356 = por %p354, %p355
      %p357 = scmp.ne.s32.totalorder %s345, %s346
      %p358 = scmp.eq.s32.totalorder %s37, 3
      %p359 = por %p357, %p358
      %p361 = scmp.ne.s32.totalorder %s346, %s360
      %p362 = scmp.eq.s32.totalorder %s37, 0
      %p363 = por %p361, %p362
      %s365 = sadd.s32 %s364, 1
      %p368 = scmp.eq.s32.totalorder %s31, 3
      %p369 = scmp.ne.s32.totalorder %s364, %s366
      %p370 = scmp.eq.s32.totalorder %s31, 0
      %p371 = por %p369, %p370
      %p372 = scmp.ne.s32.totalorder %s364, %s366
      %p373 = scmp.eq.s32.totalorder %s36, 3
      %p374 = por %p372, %p373
      %p375 = scmp.ne.s32.totalorder %s366, %s367
      %p376 = scmp.eq.s32.totalorder %s36, 0
      %p377 = por %p375, %p376
      %p378 = scmp.ne.s32.totalorder %s366, %s367
      %p379 = scmp.eq.s32.totalorder %s37, 3
      %p380 = por %p378, %p379
      %p382 = scmp.ne.s32.totalorder %s367, %s381
      %p383 = scmp.eq.s32.totalorder %s37, 0
      %p384 = por %p382, %p383
      %s386 = sadd.s32 %s385, 1
      %p389 = scmp.eq.s32.totalorder %s31, 3
      %p390 = scmp.ne.s32.totalorder %s385, %s387
      %p391 = scmp.eq.s32.totalorder %s31, 0
      %p392 = por %p390, %p391
      %p393 = scmp.ne.s32.totalorder %s385, %s387
      %p394 = scmp.eq.s32.totalorder %s36, 3
      %p395 = por %p393, %p394
      %p396 = scmp.ne.s32.totalorder %s387, %s388
      %p397 = scmp.eq.s32.totalorder %s36, 0
      %p398 = por %p396, %p397
      %p399 = scmp.ne.s32.totalorder %s387, %s388
      %p400 = scmp.eq.s32.totalorder %s37, 3
      %p401 = por %p399, %p400
      %p403 = scmp.ne.s32.totalorder %s388, %s402
      %p404 = scmp.eq.s32.totalorder %s37, 0
      %p405 = por %p403, %p404
      %s407 = sadd.s32 %s406, 1
      %p410 = scmp.eq.s32.totalorder %s31, 3
      %p411 = scmp.ne.s32.totalorder %s406, %s408
      %p412 = scmp.eq.s32.totalorder %s31, 0
      %p413 = por %p411, %p412
      %p414 = scmp.ne.s32.totalorder %s406, %s408
      %p415 = scmp.eq.s32.totalorder %s36, 3
      %p416 = por %p414, %p415
      %p417 = scmp.ne.s32.totalorder %s408, %s409
      %p418 = scmp.eq.s32.totalorder %s36, 0
      %p419 = por %p417, %p418
      %p420 = scmp.ne.s32.totalorder %s408, %s409
      %p421 = scmp.eq.s32.totalorder %s37, 3
      %p422 = por %p420, %p421
      %p424 = scmp.ne.s32.totalorder %s409, %s423
      %p425 = scmp.eq.s32.totalorder %s37, 0
      %p426 = por %p424, %p425
      %p427 = scmp.le.s32.totalorder 1, %s31
      %p428 = scmp.lt.s32.totalorder %s31, 5
      %p429 = pnand %p427, %p428
      %p430 = pneg %p429
      // Predicated region
      $region9: #{generator_forward.2} parent=5 // pred_check
        _
      $region10: #{generator_forward.2} parent=5 // pred_check_branch
        %432 = sbr.rel (%p429) target = $region12
      $region11: #{generator_forward.2} parent=5 // pred_region
        %s433 = ssub.s32 %s31, 1
        // Predicated region
        $region13: #{generator_forward.2} parent=11 // pred_check
          %p434 = pneg %p104
        $region14: #{generator_forward.2} parent=11 // pred_check_branch
          %436 = sbr.rel (%p434) target = $region16
        $region15: #{generator_forward.2} parent=11 // pred_region
          %s438 = ssub.s32 16, 16
          %439 = vsyncadd [#allocation4], %s438
          %s441 = sshll.u32 [#allocation3], 4
          %s442 = int_to_ptr.vmem [resolvable:$true] %s441
          %444 = dma.hbm_to_vmem [thread:$0]  %s2, 16, %s442, [#allocation4]
        $region16: #{generator_forward.2} parent=11 // pred_fallthru
          _
        // Predicated region
        $region17: #{generator_forward.2} parent=11 // pred_check
          %p445 = pneg %p125
        $region18: #{generator_forward.2} parent=11 // pred_check_branch
          %447 = sbr.rel (%p445) target = $region20
        $region19: #{generator_forward.2} parent=11 // pred_region
          %s449 = ssub.s32 16, 16
          %450 = vsyncadd [#allocation6], %s449
          %s452 = sshll.u32 [#allocation5], 4
          %s453 = int_to_ptr.vmem [resolvable:$true] %s452
          %455 = dma.hbm_to_vmem [thread:$0]  %s3, 16, %s453, [#allocation6]
        $region20: #{generator_forward.2} parent=11 // pred_fallthru
          _
        // Predicated region
        $region21: #{generator_forward.2} parent=11 // pred_check
          %p456 = pneg %p146
        $region22: #{generator_forward.2} parent=11 // pred_check_branch
          %458 = sbr.rel (%p456) target = $region24
        $region23: #{generator_forward.2} parent=11 // pred_region
          %s460 = ssub.s32 16, 16
          %461 = vsyncadd [#allocation6], %s460
          %s463 = sshll.u32 [#allocation7], 4
          %s464 = int_to_ptr.vmem [resolvable:$true] %s463
          %466 = dma.hbm_to_vmem [thread:$0]  %s4, 16, %s464, [#allocation6]
        $region24: #{generator_forward.2} parent=11 // pred_fallthru
          _
        // Predicated region
        $region25: #{generator_forward.2} parent=11 // pred_check
          %p467 = pneg %p167
        $region26: #{generator_forward.2} parent=11 // pred_check_branch
          %469 = sbr.rel (%p467) target = $region28
        $region27: #{generator_forward.2} parent=11 // pred_region
          %s471 = ssub.s32 256, 256
          %472 = vsyncadd [#allocation9], %s471
          %s473 = sshll.u32 [#allocation8], 4
          %s474 = int_to_ptr.vmem [resolvable:$true] %s473
          %479 = dma.hbm_to_vmem [thread:$0]  %s5, 256, %s474, [#allocation9], 64, 64, 4
        $region28: #{generator_forward.2} parent=11 // pred_fallthru
          _
        // Predicated region
        $region29: #{generator_forward.2} parent=11 // pred_check
          %p480 = pneg %p188
        $region30: #{generator_forward.2} parent=11 // pred_check_branch
          %482 = sbr.rel (%p480) target = $region32
        $region31: #{generator_forward.2} parent=11 // pred_region
          %s484 = ssub.s32 16, 16
          %485 = vsyncadd [#allocation9], %s484
          %s487 = sshll.u32 [#allocation10], 4
          %s488 = int_to_ptr.vmem [resolvable:$true] %s487
          %490 = dma.hbm_to_vmem [thread:$0]  %s6, 16, %s488, [#allocation9]
        $region32: #{generator_forward.2} parent=11 // pred_fallthru
          _
        // Predicated region
        $region33: #{generator_forward.2} parent=11 // pred_check
          %p491 = pneg %p209
        $region34: #{generator_forward.2} parent=11 // pred_check_branch
          %493 = sbr.rel (%p491) target = $region36
        $region35: #{generator_forward.2} parent=11 // pred_region
          %s495 = ssub.s32 16, 16
          %496 = vsyncadd [#allocation12], %s495
          %s498 = sshll.u32 [#allocation11], 4
          %s499 = int_to_ptr.vmem [resolvable:$true] %s498
          %501 = dma.hbm_to_vmem [thread:$0]  %s7, 16, %s499, [#allocation12]
        $region36: #{generator_forward.2} parent=11 // pred_fallthru
          _
        // Predicated region
        $region37: #{generator_forward.2} parent=11 // pred_check
          %p502 = pneg %p230
        $region38: #{generator_forward.2} parent=11 // pred_check_branch
          %504 = sbr.rel (%p502) target = $region40
        $region39: #{generator_forward.2} parent=11 // pred_region
          %s506 = ssub.s32 16, 16
          %507 = vsyncadd [#allocation12], %s506
          %s509 = sshll.u32 [#allocation13], 4
          %s510 = int_to_ptr.vmem [resolvable:$true] %s509
          %512 = dma.hbm_to_vmem [thread:$0]  %s8, 16, %s510, [#allocation12]
        $region40: #{generator_forward.2} parent=11 // pred_fallthru
          _
        // Predicated region
        $region41: #{generator_forward.2} parent=11 // pred_check
          %p513 = pneg %p251
        $region42: #{generator_forward.2} parent=11 // pred_check_branch
          %515 = sbr.rel (%p513) target = $region44
        $region43: #{generator_forward.2} parent=11 // pred_region
          %s517 = ssub.s32 512, 512
          %518 = vsyncadd [#allocation15], %s517
          %s519 = sshll.u32 [#allocation14], 4
          %s520 = int_to_ptr.vmem [resolvable:$true] %s519
          %525 = dma.hbm_to_vmem [thread:$0]  %s9, 512, %s520, [#allocation15], 64, 64, 4
        $region44: #{generator_forward.2} parent=11 // pred_fallthru
          _
        // Predicated region
        $region45: #{generator_forward.2} parent=11 // pred_check
          %p526 = pneg %p272
        $region46: #{generator_forward.2} parent=11 // pred_check_branch
          %528 = sbr.rel (%p526) target = $region48
        $region47: #{generator_forward.2} parent=11 // pred_region
          %s530 = ssub.s32 16, 16
          %531 = vsyncadd [#allocation15], %s530
          %s533 = sshll.u32 [#allocation16], 4
          %s534 = int_to_ptr.vmem [resolvable:$true] %s533
          %536 = dma.hbm_to_vmem [thread:$0]  %s10, 16, %s534, [#allocation15]
        $region48: #{generator_forward.2} parent=11 // pred_fallthru
          _
        // Predicated region
        $region49: #{generator_forward.2} parent=11 // pred_check
          %p537 = pneg %p293
        $region50: #{generator_forward.2} parent=11 // pred_check_branch
          %539 = sbr.rel (%p537) target = $region52
        $region51: #{generator_forward.2} parent=11 // pred_region
          %s541 = ssub.s32 16, 16
          %542 = vsyncadd [#allocation18], %s541
          %s544 = sshll.u32 [#allocation17], 4
          %s545 = int_to_ptr.vmem [resolvable:$true] %s544
          %547 = dma.hbm_to_vmem [thread:$0]  %s11, 16, %s545, [#allocation18]
        $region52: #{generator_forward.2} parent=11 // pred_fallthru
          _
        // Predicated region
        $region53: #{generator_forward.2} parent=11 // pred_check
          %p548 = pneg %p314
        $region54: #{generator_forward.2} parent=11 // pred_check_branch
          %550 = sbr.rel (%p548) target = $region56
        $region55: #{generator_forward.2} parent=11 // pred_region
          %s552 = ssub.s32 16, 16
          %553 = vsyncadd [#allocation18], %s552
          %s555 = sshll.u32 [#allocation19], 4
          %s556 = int_to_ptr.vmem [resolvable:$true] %s555
          %558 = dma.hbm_to_vmem [thread:$0]  %s12, 16, %s556, [#allocation18]
        $region56: #{generator_forward.2} parent=11 // pred_fallthru
          _
        // Predicated region
        $region57: #{generator_forward.2} parent=11 // pred_check
          %p559 = pneg %p335
        $region58: #{generator_forward.2} parent=11 // pred_check_branch
          %561 = sbr.rel (%p559) target = $region60
        $region59: #{generator_forward.2} parent=11 // pred_region
          %s563 = ssub.s32 2048, 2048
          %564 = vsyncadd [#allocation21], %s563
          %s565 = sshll.u32 [#allocation20], 4
          %s566 = int_to_ptr.vmem [resolvable:$true] %s565
          %571 = dma.hbm_to_vmem [thread:$0]  %s13, 2048, %s566, [#allocation21], 128, 128, 8
        $region60: #{generator_forward.2} parent=11 // pred_fallthru
          _
        // Predicated region
        $region61: #{generator_forward.2} parent=11 // pred_check
          %p572 = pneg %p356
        $region62: #{generator_forward.2} parent=11 // pred_check_branch
          %574 = sbr.rel (%p572) target = $region64
        $region63: #{generator_forward.2} parent=11 // pred_region
          %s576 = ssub.s32 32, 32
          %577 = vsyncadd [#allocation21], %s576
          %s579 = sshll.u32 [#allocation22], 4
          %s580 = int_to_ptr.vmem [resolvable:$true] %s579
          %582 = dma.hbm_to_vmem [thread:$0]  %s14, 32, %s580, [#allocation21]
        $region64: #{generator_forward.2} parent=11 // pred_fallthru
          _
        // Predicated region
        $region65: #{generator_forward.2} parent=11 // pred_check
          %p583 = pneg %p377
        $region66: #{generator_forward.2} parent=11 // pred_check_branch
          %585 = sbr.rel (%p583) target = $region68
        $region67: #{generator_forward.2} parent=11 // pred_region
          %s587 = ssub.s32 32, 32
          %588 = vsyncadd [#allocation24], %s587
          %s590 = sshll.u32 [#allocation23], 4
          %s591 = int_to_ptr.vmem [resolvable:$true] %s590
          %593 = dma.hbm_to_vmem [thread:$0]  %s15, 32, %s591, [#allocation24]
        $region68: #{generator_forward.2} parent=11 // pred_fallthru
          _
        // Predicated region
        $region69: #{generator_forward.2} parent=11 // pred_check
          %p594 = pneg %p398
        $region70: #{generator_forward.2} parent=11 // pred_check_branch
          %596 = sbr.rel (%p594) target = $region72
        $region71: #{generator_forward.2} parent=11 // pred_region
          %s598 = ssub.s32 32, 32
          %599 = vsyncadd [#allocation24], %s598
          %s601 = sshll.u32 [#allocation25], 4
          %s602 = int_to_ptr.vmem [resolvable:$true] %s601
          %604 = dma.hbm_to_vmem [thread:$0]  %s16, 32, %s602, [#allocation24]
        $region72: #{generator_forward.2} parent=11 // pred_fallthru
          _
      $region12: #{generator_forward.2} parent=5 // pred_fallthru
        _
      %p605 = scmp.lt.s32.totalorder %s31, 4
      // Predicated region
      $region73: #{generator_forward.2} parent=5 // pred_check
        %p606 = pneg %p605
      $region74: #{generator_forward.2} parent=5 // pred_check_branch
        %608 = sbr.rel (%p606) target = $region76
      $region75: #{generator_forward.2} parent=5 // pred_region
        // Predicated region
        $region77: #{generator_forward.2} parent=75 // pred_check
          %p609 = pneg %p51
        $region78: #{generator_forward.2} parent=75 // pred_check_branch
          %611 = sbr.rel (%p609) target = $region80
        $region79: #{generator_forward.2} parent=75 // pred_region
          %p612 = scmp.lt.s32.totalorder %s31, 3
          %s613 = scalar_select %p612, %s31, 3
          %s614 = smul.addr %s613, 4
          %s615 = scalar_lea.vmem %s0, %s614
        $region80: #{generator_forward.2} parent=75 // pred_fallthru
          _
        // Predicated region
        $region81: #{generator_forward.2} parent=75 // pred_check
          %p616 = pneg %p77
        $region82: #{generator_forward.2} parent=75 // pred_check_branch
          %618 = sbr.rel (%p616) target = $region84
        $region83: #{generator_forward.2} parent=75 // pred_region
          %s619 = smul.u32 16, %s31
          %p620 = scmp.lt.s32.totalorder %s619, 63
          %s621 = scalar_select %p620, %s619, 63
          %s622 = smul.addr %s621, 4
          %s623 = scalar_lea.vmem %s1, %s622
          %s624 = smul.u32 16, %s31
        $region84: #{generator_forward.2} parent=75 // pred_fallthru
          _
      $region76: #{generator_forward.2} parent=5 // pred_fallthru
        _
      %p625 = scmp.le.s32.totalorder 1, %s31
      %p626 = scmp.lt.s32.totalorder %s31, 5
      %p627 = pnand %p625, %p626
      %p628 = pneg %p627
      // Predicated region
      $region85: #{generator_forward.2} parent=5 // pred_check
        _
      $region86: #{generator_forward.2} parent=5 // pred_check_branch
        %630 = sbr.rel (%p627) target = $region88
      $region87: #{generator_forward.2} parent=5 // pred_region
        %s631 = ssub.s32 %s31, 1
        // Predicated region
        $region89: #{generator_forward.2} parent=87 // pred_check
          %p632 = pneg %p104
        $region90: #{generator_forward.2} parent=87 // pred_check_branch
          %634 = sbr.rel (%p632) target = $region92
        $region91: #{generator_forward.2} parent=87 // pred_region
          %635 = dma.done [#allocation4], 16
        $region92: #{generator_forward.2} parent=87 // pred_fallthru
          _
        // Predicated region
        $region93: #{generator_forward.2} parent=87 // pred_check
          %p636 = pneg %p125
        $region94: #{generator_forward.2} parent=87 // pred_check_branch
          %638 = sbr.rel (%p636) target = $region96
        $region95: #{generator_forward.2} parent=87 // pred_region
          %639 = dma.done [#allocation6], 16
        $region96: #{generator_forward.2} parent=87 // pred_fallthru
          _
        // Predicated region
        $region97: #{generator_forward.2} parent=87 // pred_check
          %p640 = pneg %p146
        $region98: #{generator_forward.2} parent=87 // pred_check_branch
          %642 = sbr.rel (%p640) target = $region100
        $region99: #{generator_forward.2} parent=87 // pred_region
          %643 = dma.done [#allocation6], 16
        $region100: #{generator_forward.2} parent=87 // pred_fallthru
          _
        // Predicated region
        $region101: #{generator_forward.2} parent=87 // pred_check
          %p644 = pneg %p167
        $region102: #{generator_forward.2} parent=87 // pred_check_branch
          %646 = sbr.rel (%p644) target = $region104
        $region103: #{generator_forward.2} parent=87 // pred_region
          %647 = dma.done [#allocation9], 256
        $region104: #{generator_forward.2} parent=87 // pred_fallthru
          _
        // Predicated region
        $region105: #{generator_forward.2} parent=87 // pred_check
          %p648 = pneg %p188
        $region106: #{generator_forward.2} parent=87 // pred_check_branch
          %650 = sbr.rel (%p648) target = $region108
        $region107: #{generator_forward.2} parent=87 // pred_region
          %651 = dma.done [#allocation9], 16
        $region108: #{generator_forward.2} parent=87 // pred_fallthru
          _
        // Predicated region
        $region109: #{generator_forward.2} parent=87 // pred_check
          %p652 = pneg %p209
        $region110: #{generator_forward.2} parent=87 // pred_check_branch
          %654 = sbr.rel (%p652) target = $region112
        $region111: #{generator_forward.2} parent=87 // pred_region
          %655 = dma.done [#allocation12], 16
        $region112: #{generator_forward.2} parent=87 // pred_fallthru
          _
        // Predicated region
        $region113: #{generator_forward.2} parent=87 // pred_check
          %p656 = pneg %p230
        $region114: #{generator_forward.2} parent=87 // pred_check_branch
          %658 = sbr.rel (%p656) target = $region116
        $region115: #{generator_forward.2} parent=87 // pred_region
          %659 = dma.done [#allocation12], 16
        $region116: #{generator_forward.2} parent=87 // pred_fallthru
          _
        // Predicated region
        $region117: #{generator_forward.2} parent=87 // pred_check
          %p660 = pneg %p251
        $region118: #{generator_forward.2} parent=87 // pred_check_branch
          %662 = sbr.rel (%p660) target = $region120
        $region119: #{generator_forward.2} parent=87 // pred_region
          %663 = dma.done [#allocation15], 512
        $region120: #{generator_forward.2} parent=87 // pred_fallthru
          _
        // Predicated region
        $region121: #{generator_forward.2} parent=87 // pred_check
          %p664 = pneg %p272
        $region122: #{generator_forward.2} parent=87 // pred_check_branch
          %666 = sbr.rel (%p664) target = $region124
        $region123: #{generator_forward.2} parent=87 // pred_region
          %667 = dma.done [#allocation15], 16
        $region124: #{generator_forward.2} parent=87 // pred_fallthru
          _
        // Predicated region
        $region125: #{generator_forward.2} parent=87 // pred_check
          %p668 = pneg %p293
        $region126: #{generator_forward.2} parent=87 // pred_check_branch
          %670 = sbr.rel (%p668) target = $region128
        $region127: #{generator_forward.2} parent=87 // pred_region
          %671 = dma.done [#allocation18], 16
        $region128: #{generator_forward.2} parent=87 // pred_fallthru
          _
        // Predicated region
        $region129: #{generator_forward.2} parent=87 // pred_check
          %p672 = pneg %p314
        $region130: #{generator_forward.2} parent=87 // pred_check_branch
          %674 = sbr.rel (%p672) target = $region132
        $region131: #{generator_forward.2} parent=87 // pred_region
          %675 = dma.done [#allocation18], 16
        $region132: #{generator_forward.2} parent=87 // pred_fallthru
          _
        // Predicated region
        $region133: #{generator_forward.2} parent=87 // pred_check
          %p676 = pneg %p335
        $region134: #{generator_forward.2} parent=87 // pred_check_branch
          %678 = sbr.rel (%p676) target = $region136
        $region135: #{generator_forward.2} parent=87 // pred_region
          %679 = dma.done [#allocation21], 2048
        $region136: #{generator_forward.2} parent=87 // pred_fallthru
          _
        // Predicated region
        $region137: #{generator_forward.2} parent=87 // pred_check
          %p680 = pneg %p356
        $region138: #{generator_forward.2} parent=87 // pred_check_branch
          %682 = sbr.rel (%p680) target = $region140
        $region139: #{generator_forward.2} parent=87 // pred_region
          %683 = dma.done [#allocation21], 32
        $region140: #{generator_forward.2} parent=87 // pred_fallthru
          _
        // Predicated region
        $region141: #{generator_forward.2} parent=87 // pred_check
          %p684 = pneg %p377
        $region142: #{generator_forward.2} parent=87 // pred_check_branch
          %686 = sbr.rel (%p684) target = $region144
        $region143: #{generator_forward.2} parent=87 // pred_region
          %687 = dma.done [#allocation24], 32
        $region144: #{generator_forward.2} parent=87 // pred_fallthru
          _
        // Predicated region
        $region145: #{generator_forward.2} parent=87 // pred_check
          %p688 = pneg %p398
        $region146: #{generator_forward.2} parent=87 // pred_check_branch
          %690 = sbr.rel (%p688) target = $region148
        $region147: #{generator_forward.2} parent=87 // pred_region
          %691 = dma.done [#allocation24], 32
        $region148: #{generator_forward.2} parent=87 // pred_fallthru
          _
        %p692 = scmp.lt.s32.totalorder %s36, 3
        %s693 = scalar_select %p692, %s36, 3
        %s694 = smul.addr %s693, 4
        %s695 = scalar_lea.vmem %s0, %s694
        %p696 = pneg %p57
        %p697 = pneg %p54
        %s698 = smul.u32 16, %s36
        %p699 = scmp.lt.s32.totalorder %s698, 63
        %s700 = scalar_select %p699, %s698, 63
        %s701 = smul.addr %s700, 4
        %s702 = scalar_lea.vmem %s1, %s701
        %p703 = pneg %p83
        %p704 = pneg %p80
        %p705 = pneg %p104
        %p706 = pneg %p101
        %p707 = pneg %p125
        %p708 = pneg %p122
        %p709 = pneg %p146
        %p710 = pneg %p143
        %p711 = pneg %p167
        %p712 = pneg %p164
        %p713 = pneg %p188
        %p714 = pneg %p185
        %p715 = pneg %p209
        %p716 = pneg %p206
        %p717 = pneg %p230
        %p718 = pneg %p227
        %p719 = pneg %p251
        %p720 = pneg %p248
        %p721 = pneg %p272
        %p722 = pneg %p269
        %p723 = pneg %p293
        %p724 = pneg %p290
        %p725 = pneg %p314
        %p726 = pneg %p311
        %p727 = pneg %p335
        %p728 = pneg %p332
        %p729 = pneg %p356
        %p730 = pneg %p353
        %p731 = pneg %p377
        %p732 = pneg %p374
        %p733 = pneg %p398
        %p734 = pneg %p395
        %p735 = pneg %p419
        %p736 = pneg %p416
        %p737 = scmp.lt.s32.totalorder %s36, 3
        %s738 = scalar_select %p737, %s36, 3
        %s739 = smul.addr %s738, 4
        %s740 = scalar_lea.vmem %s0, %s739
        %s741 = smul.u32 16, %s36
        %p742 = scmp.lt.s32.totalorder %s741, 63
        %s743 = scalar_select %p742, %s741, 63
        %s744 = smul.addr %s743, 4
        %s745 = scalar_lea.vmem %s1, %s744
        %s746 = smul.u32 16, %s36
        %p748 = scmp.eq.s32.totalorder %s36, 0
        // Predicated region
        $region149: #{generator_forward.2} parent=87 // pred_check
          %p749 = pneg %p748
        $region150: #{generator_forward.2} parent=87 // pred_check_branch
          %751 = sbr.rel (%p749) target = $region152
        $region151: #{generator_forward.2} parent=87 // pred_region
          %vm752 = vcmask 261120
          %753 = vst.msk [vmem:[#allocation2] sm:$0xff] %vm752, 0.0
        $region152: #{generator_forward.2} parent=87 // pred_fallthru
          _
        %v754 = vld [vmem:[#allocation2] sm:$0xff]
        %v755 = vld [vmem:[%s740] sm:$0xf]
        %v756 = vld [vmem:[%s745] sm:$0xf]
        %v757 = vld [vmem:[%s745 + $0x4] sm:$0xf]
        %v758 = vld [vmem:[%s745 + $0x8] sm:$0xf]
        %v759 = vld [vmem:[%s745 + $0xc] sm:$0xf]
        %v760 = vld [vmem:[%s745 + $0x10] sm:$0xf]
        %v761 = vld [vmem:[%s745 + $0x14] sm:$0xf]
        %v762 = vld [vmem:[%s745 + $0x18] sm:$0xf]
        %v763 = vld [vmem:[%s745 + $0x1c] sm:$0xf]
        %v764 = vld [vmem:[%s745 + $0x20] sm:$0xf]
        %v765 = vld [vmem:[%s745 + $0x24] sm:$0xf]
        %v766 = vld [vmem:[%s745 + $0x28] sm:$0xf]
        %v767 = vld [vmem:[%s745 + $0x2c] sm:$0xf]
        %v768 = vld [vmem:[%s745 + $0x30] sm:$0xf]
        %v769 = vld [vmem:[%s745 + $0x34] sm:$0xf]
        %v770 = vld [vmem:[%s745 + $0x38] sm:$0xf]
        %v771 = vld [vmem:[%s745 + $0x3c] sm:$0xf]
        %v788 = vunpack.c.l.b16 %v756
        %v789 = vunpack.c.l.b16 %v757
        %v790 = vunpack.c.l.b16 %v758
        %v791 = vunpack.c.l.b16 %v759
        %v792 = vunpack.c.l.b16 %v760
        %v793 = vunpack.c.l.b16 %v761
        %v794 = vunpack.c.l.b16 %v762
        %v795 = vunpack.c.l.b16 %v763
        %v796 = vunpack.c.l.b16 %v764
        %v797 = vunpack.c.l.b16 %v765
        %v798 = vunpack.c.l.b16 %v766
        %v799 = vunpack.c.l.b16 %v767
        %v800 = vunpack.c.l.b16 %v768
        %v801 = vunpack.c.l.b16 %v769
        %v802 = vunpack.c.l.b16 %v770
        %v803 = vunpack.c.l.b16 %v771
        %v804 = vpack.c.b16 %v789, %v788
        %v805 = vpack.c.b16 %v791, %v790
        %v806 = vpack.c.b16 %v793, %v792
        %v807 = vpack.c.b16 %v795, %v794
        %v808 = vpack.c.b16 %v797, %v796
        %v809 = vpack.c.b16 %v799, %v798
        %v810 = vpack.c.b16 %v801, %v800
        %v811 = vpack.c.b16 %v803, %v802
        %820 = vmatprep.subr.bf16.mxu0 0
        %821 = vmatpush1.bf16.msra.mxu0 %v804
        %822 = vmatprep.subr.bf16.mxu0 0
        %823 = vmatpush1.bf16.msra.mxu0 %v805
        %824 = vmatprep.subr.bf16.mxu0 0
        %825 = vmatpush1.bf16.msra.mxu0 %v806
        %826 = vmatprep.subr.bf16.mxu0 0
        %827 = vmatpush1.bf16.msra.mxu0 %v807
        %828 = vmatprep.subr.bf16.mxu0 0
        %829 = vmatpush1.bf16.msra.mxu0 %v808
        %830 = vmatprep.subr.bf16.mxu0 0
        %831 = vmatpush1.bf16.msra.mxu0 %v809
        %832 = vmatprep.subr.bf16.mxu0 0
        %833 = vmatpush1.bf16.msra.mxu0 %v810
        %834 = vmatprep.subr.bf16.mxu0 0
        %835 = vmatpush1.bf16.msra.mxu0 %v811
        %836 = vmatprep.subr.bf16.mxu0 0
        %837 = vmatpush1.bf16.msra.mxu0 0
        %838 = vmatprep.subr.bf16.mxu0 0
        %839 = vmatpush1.bf16.msra.mxu0 0
        %840 = vmatprep.subr.bf16.mxu0 0
        %841 = vmatpush1.bf16.msra.mxu0 0
        %842 = vmatprep.subr.bf16.mxu0 0
        %843 = vmatpush1.bf16.msra.mxu0 0
        %844 = vmatprep.subr.bf16.mxu0 0
        %845 = vmatpush1.bf16.msra.mxu0 0
        %846 = vmatprep.subr.bf16.mxu0 0
        %847 = vmatpush1.bf16.msra.mxu0 0
        %848 = vmatprep.subr.bf16.mxu0 0
        %849 = vmatpush1.bf16.msra.mxu0 0
        %850 = vmatprep.subr.bf16.mxu0 0
        %851 = vmatpush1.bf16.msra.mxu0 0
        %852 = vmatprep.mubr.bf16.mxu0 0
        %853 = vmatmul.mubr.bf16.gmra.mrb[0].mxu0 %v755
        %v854 = vpop.f32.mrb[0].mxu0
        %v855 = vadd.f32 0.0, %v854
        %v856 = vpop.f32.mrb[0].mxu0
        %v857 = vpop.f32.mrb[0].mxu0
        %v858 = vpop.f32.mrb[0].mxu0
        %859 = vdwg.mxu0
        %v860 = vadd.f32 %v754, %v855
        %vm861 = vcmask 261120
        %862 = vst.msk [vmem:[#allocation2] sm:$0xff] %vm861, %v860
        %p863 = scmp.eq.s32.totalorder %s36, 3
        // Predicated region
        $region153: #{generator_forward.2} parent=87 // pred_check
          %p864 = pneg %p863
        $region154: #{generator_forward.2} parent=87 // pred_check_branch
          %866 = sbr.rel (%p864) target = $region156
        $region155: #{generator_forward.2} parent=87 // pred_region
          %v867 = vld [vmem:[#allocation2] sm:$0xff]
          %v868 = vld [vmem:[#allocation3] sm:$0x1]
          %v870 = vlaneseq
          %v871 = vshrl.u32 %v870, 7
          %v872 = vsub.s32 0, %v871
          %v873 = vrot.slane %v868, %v872
          %v875 = vadd.f32 %v867, %v873
          %v876 = vld [vmem:[#allocation5] sm:$0x1]
          %v877 = vld [vmem:[#allocation7] sm:$0x1]
          %v878 = vsel %vm861, %v875, 0.0
          %v879 = vrot.slane %v878, 4
          %v880 = vadd.f32 %v878, %v879
          %v881 = vrot.slane %v880, 2
          %v882 = vadd.f32 %v880, %v881
          %v883 = vrot.slane %v882, 1
          %v884 = vadd.f32 %v882, %v883
          %v885 = vmul.f32 %v884, 0.125
          %v886 = vsub.f32 %v875, %v885
          %v887 = vmul.f32 %v886, %v886
          %v888 = vsel %vm861, %v887, 0.0
          %v889 = vrot.slane %v888, 4
          %v890 = vadd.f32 %v888, %v889
          %v891 = vrot.slane %v890, 2
          %v892 = vadd.f32 %v890, %v891
          %v893 = vrot.slane %v892, 1
          %v894 = vadd.f32 %v892, %v893
          %v895 = vmul.f32 %v894, 0.125
          %v896 = vadd.f32 %v895, 1e-05
          %v897 = vrsqrt.pop %v896
          %v898 = vmul.f32 %v886, %v897
          %v900 = vlaneseq
          %v901 = vshrl.u32 %v900, 7
          %v902 = vsub.s32 0, %v901
          %v903 = vrot.slane %v876, %v902
          %v905 = vmul.f32 %v898, %v903
          %v907 = vlaneseq
          %v908 = vshrl.u32 %v907, 7
          %v909 = vsub.s32 0, %v908
          %v910 = vrot.slane %v877, %v909
          %v912 = vadd.f32 %v905, %v910
          %v913 = vmax.f32 %v912, 0.0
          %v914 = vpack.c.bf16 %v913, %v913
          %v915 = vld [vmem:[#allocation8] sm:$0xf]
          %v916 = vld [vmem:[#allocation8 + $0x4] sm:$0xf]
          %v917 = vld [vmem:[#allocation8 + $0x8] sm:$0xf]
          %v918 = vld [vmem:[#allocation8 + $0xc] sm:$0xf]
          %v919 = vld [vmem:[#allocation10] sm:$0x1]
          %v921 = vlaneseq
          %v922 = vshrl.u32 %v921, 7
          %v923 = vsub.s32 0, %v922
          %v924 = vrot.slane %v919, %v923
          %v930 = vunpack.c.l.b16 %v915
          %v931 = vunpack.c.l.b16 %v916
          %v932 = vunpack.c.l.b16 %v917
          %v933 = vunpack.c.l.b16 %v918
          %v934 = vpack.c.b16 %v931, %v930
          %v935 = vpack.c.b16 %v933, %v932
          %v939 = vsel %vm861, %v914, 0
          %941 = vmatprep.subr.bf16.mxu0 0
          %942 = vmatpush1.bf16.msra.mxu0 %v934
          %943 = vmatprep.subr.bf16.mxu0 0
          %944 = vmatpush1.bf16.msra.mxu0 %v935
          %945 = vmatprep.subr.bf16.mxu0 0
          %946 = vmatpush1.bf16.msra.mxu0 0
          %947 = vmatprep.subr.bf16.mxu0 0
          %948 = vmatpush1.bf16.msra.mxu0 0
          %949 = vmatprep.subr.bf16.mxu0 0
          %950 = vmatpush1.bf16.msra.mxu0 0
          %951 = vmatprep.subr.bf16.mxu0 0
          %952 = vmatpush1.bf16.msra.mxu0 0
          %953 = vmatprep.subr.bf16.mxu0 0
          %954 = vmatpush1.bf16.msra.mxu0 0
          %955 = vmatprep.subr.bf16.mxu0 0
          %956 = vmatpush1.bf16.msra.mxu0 0
          %957 = vmatprep.subr.bf16.mxu0 0
          %958 = vmatpush1.bf16.msra.mxu0 0
          %959 = vmatprep.subr.bf16.mxu0 0
          %960 = vmatpush1.bf16.msra.mxu0 0
          %961 = vmatprep.subr.bf16.mxu0 0
          %962 = vmatpush1.bf16.msra.mxu0 0
          %963 = vmatprep.subr.bf16.mxu0 0
          %964 = vmatpush1.bf16.msra.mxu0 0
          %965 = vmatprep.subr.bf16.mxu0 0
          %966 = vmatpush1.bf16.msra.mxu0 0
          %967 = vmatprep.subr.bf16.mxu0 0
          %968 = vmatpush1.bf16.msra.mxu0 0
          %969 = vmatprep.subr.bf16.mxu0 0
          %970 = vmatpush1.bf16.msra.mxu0 0
          %971 = vmatprep.subr.bf16.mxu0 0
          %972 = vmatpush1.bf16.msra.mxu0 0
          %973 = vmatprep.mubr.bf16.mxu0 0
          %974 = vmatmul.mubr.bf16.gmra.mrb[0].mxu0 %v939
          %v975 = vpop.f32.mrb[0].mxu0
          %v976 = vadd.f32 %v924, %v975
          %v977 = vpop.f32.mrb[0].mxu0
          %v978 = vpop.f32.mrb[0].mxu0
          %v979 = vpop.f32.mrb[0].mxu0
          %980 = vdwg.mxu0
          %v981 = vld [vmem:[#allocation11] sm:$0x1]
          %v982 = vld [vmem:[#allocation13] sm:$0x1]
          %vm983 = vcmask 523264
          %v984 = vsel %vm983, %v976, 0.0
          %v985 = vrot.slane %v984, 4
          %v986 = vadd.f32 %v984, %v985
          %v987 = vrot.slane %v986, 2
          %v988 = vadd.f32 %v986, %v987
          %v989 = vrot.slane %v988, 1
          %v990 = vadd.f32 %v988, %v989
          %v991 = vmul.f32 %v990, 0.125
          %v992 = vsub.f32 %v976, %v991
          %v993 = vmul.f32 %v992, %v992
          %v994 = vsel %vm983, %v993, 0.0
          %v995 = vrot.slane %v994, 4
          %v996 = vadd.f32 %v994, %v995
          %v997 = vrot.slane %v996, 2
          %v998 = vadd.f32 %v996, %v997
          %v999 = vrot.slane %v998, 1
          %v1000 = vadd.f32 %v998, %v999
          %v1001 = vmul.f32 %v1000, 0.125
          %v1002 = vadd.f32 %v1001, 1e-05
          %v1003 = vrsqrt.pop %v1002
          %v1004 = vmul.f32 %v992, %v1003
          %v1006 = vlaneseq
          %v1007 = vshrl.u32 %v1006, 7
          %v1008 = vsub.s32 0, %v1007
          %v1009 = vrot.slane %v981, %v1008
          %v1011 = vmul.f32 %v1004, %v1009
          %v1013 = vlaneseq
          %v1014 = vshrl.u32 %v1013, 7
          %v1015 = vsub.s32 0, %v1014
          %v1016 = vrot.slane %v982, %v1015
          %v1018 = vadd.f32 %v1011, %v1016
          %v1019 = vmax.f32 %v1018, 0.0
          %v1020 = vpack.c.bf16 %v1019, %v1019
          %v1021 = vld [vmem:[#allocation14] sm:$0xf]
          %v1022 = vld [vmem:[#allocation14 + $0x4] sm:$0xf]
          %v1023 = vld [vmem:[#allocation14 + $0x8] sm:$0xf]
          %v1024 = vld [vmem:[#allocation14 + $0xc] sm:$0xf]
          %v1025 = vld [vmem:[#allocation14 + $0x10] sm:$0xf]
          %v1026 = vld [vmem:[#allocation14 + $0x14] sm:$0xf]
          %v1027 = vld [vmem:[#allocation14 + $0x18] sm:$0xf]
          %v1028 = vld [vmem:[#allocation14 + $0x1c] sm:$0xf]
          %v1029 = vld [vmem:[#allocation16] sm:$0x1]
          %v1031 = vlaneseq
          %v1032 = vshrl.u32 %v1031, 7
          %v1033 = vsub.s32 0, %v1032
          %v1034 = vrot.slane %v1029, %v1033
          %v1044 = vunpack.c.l.b16 %v1021
          %v1045 = vunpack.c.l.b16 %v1022
          %v1046 = vunpack.c.l.b16 %v1023
          %v1047 = vunpack.c.l.b16 %v1024
          %v1048 = vunpack.c.l.b16 %v1025
          %v1049 = vunpack.c.l.b16 %v1026
          %v1050 = vunpack.c.l.b16 %v1027
          %v1051 = vunpack.c.l.b16 %v1028
          %v1052 = vpack.c.b16 %v1045, %v1044
          %v1053 = vpack.c.b16 %v1047, %v1046
          %v1054 = vpack.c.b16 %v1049, %v1048
          %v1055 = vpack.c.b16 %v1051, %v1050
          %v1061 = vsel %vm983, %v1020, 0
          %1063 = vmatprep.subr.bf16.mxu0 0
          %1064 = vmatpush1.bf16.msra.mxu0 %v1052
          %1065 = vmatprep.subr.bf16.mxu0 0
          %1066 = vmatpush1.bf16.msra.mxu0 %v1053
          %1067 = vmatprep.subr.bf16.mxu0 0
          %1068 = vmatpush1.bf16.msra.mxu0 %v1054
          %1069 = vmatprep.subr.bf16.mxu0 0
          %1070 = vmatpush1.bf16.msra.mxu0 %v1055
          %1071 = vmatprep.subr.bf16.mxu0 0
          %1072 = vmatpush1.bf16.msra.mxu0 0
          %1073 = vmatprep.subr.bf16.mxu0 0
          %1074 = vmatpush1.bf16.msra.mxu0 0
          %1075 = vmatprep.subr.bf16.mxu0 0
          %1076 = vmatpush1.bf16.msra.mxu0 0
          %1077 = vmatprep.subr.bf16.mxu0 0
          %1078 = vmatpush1.bf16.msra.mxu0 0
          %1079 = vmatprep.subr.bf16.mxu0 0
          %1080 = vmatpush1.bf16.msra.mxu0 0
          %1081 = vmatprep.subr.bf16.mxu0 0
          %1082 = vmatpush1.bf16.msra.mxu0 0
          %1083 = vmatprep.subr.bf16.mxu0 0
          %1084 = vmatpush1.bf16.msra.mxu0 0
          %1085 = vmatprep.subr.bf16.mxu0 0
          %1086 = vmatpush1.bf16.msra.mxu0 0
          %1087 = vmatprep.subr.bf16.mxu0 0
          %1088 = vmatpush1.bf16.msra.mxu0 0
          %1089 = vmatprep.subr.bf16.mxu0 0
          %1090 = vmatpush1.bf16.msra.mxu0 0
          %1091 = vmatprep.subr.bf16.mxu0 0
          %1092 = vmatpush1.bf16.msra.mxu0 0
          %1093 = vmatprep.subr.bf16.mxu0 0
          %1094 = vmatpush1.bf16.msra.mxu0 0
          %1095 = vmatprep.mubr.bf16.mxu0 0
          %1096 = vmatmul.mubr.bf16.gmra.mrb[0].mxu0 %v1061
          %v1097 = vpop.f32.mrb[0].mxu0
          %v1098 = vadd.f32 %v1034, %v1097
          %v1099 = vpop.f32.mrb[0].mxu0
          %v1100 = vpop.f32.mrb[0].mxu0
          %v1101 = vpop.f32.mrb[0].mxu0
          %1102 = vdwg.mxu0
          %v1103 = vld [vmem:[#allocation17] sm:$0x1]
          %v1104 = vld [vmem:[#allocation19] sm:$0x1]
          %v1105 = vrot.slane %v1098, 4
          %v1106 = vadd.f32 %v1098, %v1105
          %v1107 = vrot.slane %v1106, 2
          %v1108 = vadd.f32 %v1106, %v1107
          %v1109 = vrot.slane %v1108, 1
          %v1110 = vadd.f32 %v1108, %v1109
          %v1111 = vmul.f32 %v1110, 0.125
          %v1112 = vsub.f32 %v1098, %v1111
          %v1113 = vmul.f32 %v1112, %v1112
          %v1114 = vrot.slane %v1113, 4
          %v1115 = vadd.f32 %v1113, %v1114
          %v1116 = vrot.slane %v1115, 2
          %v1117 = vadd.f32 %v1115, %v1116
          %v1118 = vrot.slane %v1117, 1
          %v1119 = vadd.f32 %v1117, %v1118
          %v1120 = vmul.f32 %v1119, 0.125
          %v1121 = vadd.f32 %v1120, 1e-05
          %v1122 = vrsqrt.pop %v1121
          %v1123 = vmul.f32 %v1112, %v1122
          %v1125 = vlaneseq
          %v1126 = vshrl.u32 %v1125, 7
          %v1127 = vsub.s32 0, %v1126
          %v1128 = vrot.slane %v1103, %v1127
          %v1130 = vmul.f32 %v1123, %v1128
          %v1132 = vlaneseq
          %v1133 = vshrl.u32 %v1132, 7
          %v1134 = vsub.s32 0, %v1133
          %v1135 = vrot.slane %v1104, %v1134
          %v1137 = vadd.f32 %v1130, %v1135
          %v1138 = vmax.f32 %v1137, 0.0
          %v1139 = vpack.c.bf16 %v1138, %v1138
          %v1140 = vld [vmem:[#allocation20] sm:$0xff]
          %v1141 = vld [vmem:[#allocation20 + $0x8] sm:$0xff]
          %v1142 = vld [vmem:[#allocation20 + $0x10] sm:$0xff]
          %v1143 = vld [vmem:[#allocation20 + $0x18] sm:$0xff]
          %v1144 = vld [vmem:[#allocation20 + $0x20] sm:$0xff]
          %v1145 = vld [vmem:[#allocation20 + $0x28] sm:$0xff]
          %v1146 = vld [vmem:[#allocation20 + $0x30] sm:$0xff]
          %v1147 = vld [vmem:[#allocation20 + $0x38] sm:$0xff]
          %v1148 = vld [vmem:[#allocation20 + $0x40] sm:$0xff]
          %v1149 = vld [vmem:[#allocation20 + $0x48] sm:$0xff]
          %v1150 = vld [vmem:[#allocation20 + $0x50] sm:$0xff]
          %v1151 = vld [vmem:[#allocation20 + $0x58] sm:$0xff]
          %v1152 = vld [vmem:[#allocation20 + $0x60] sm:$0xff]
          %v1153 = vld [vmem:[#allocation20 + $0x68] sm:$0xff]
          %v1154 = vld [vmem:[#allocation20 + $0x70] sm:$0xff]
          %v1155 = vld [vmem:[#allocation20 + $0x78] sm:$0xff]
          %v1156 = vld [vmem:[#allocation22] sm:$0x3]
          %v1158 = vlaneseq
          %v1159 = vshrl.u32 %v1158, 7
          %v1160 = vsub.s32 0, %v1159
          %v1161 = vrot.slane %v1156, %v1160
          %v1162 = vlaneseq
          %v1163 = vshrl.u32 %v1162, 7
          %v1164 = vsub.s32 1, %v1163
          %v1165 = vrot.slane %v1156, %v1164
          %v1184 = vunpack.c.l.b16 %v1140
          %v1185 = vunpack.c.h.b16 %v1140
          %v1186 = vunpack.c.l.b16 %v1141
          %v1187 = vunpack.c.h.b16 %v1141
          %v1188 = vunpack.c.l.b16 %v1142
          %v1189 = vunpack.c.h.b16 %v1142
          %v1190 = vunpack.c.l.b16 %v1143
          %v1191 = vunpack.c.h.b16 %v1143
          %v1192 = vunpack.c.l.b16 %v1144
          %v1193 = vunpack.c.h.b16 %v1144
          %v1194 = vunpack.c.l.b16 %v1145
          %v1195 = vunpack.c.h.b16 %v1145
          %v1196 = vunpack.c.l.b16 %v1146
          %v1197 = vunpack.c.h.b16 %v1146
          %v1198 = vunpack.c.l.b16 %v1147
          %v1199 = vunpack.c.h.b16 %v1147
          %v1200 = vunpack.c.l.b16 %v1148
          %v1201 = vunpack.c.h.b16 %v1148
          %v1202 = vunpack.c.l.b16 %v1149
          %v1203 = vunpack.c.h.b16 %v1149
          %v1204 = vunpack.c.l.b16 %v1150
          %v1205 = vunpack.c.h.b16 %v1150
          %v1206 = vunpack.c.l.b16 %v1151
          %v1207 = vunpack.c.h.b16 %v1151
          %v1208 = vunpack.c.l.b16 %v1152
          %v1209 = vunpack.c.h.b16 %v1152
          %v1210 = vunpack.c.l.b16 %v1153
          %v1211 = vunpack.c.h.b16 %v1153
          %v1212 = vunpack.c.l.b16 %v1154
          %v1213 = vunpack.c.h.b16 %v1154
          %v1214 = vunpack.c.l.b16 %v1155
          %v1215 = vunpack.c.h.b16 %v1155
          %v1216 = vpack.c.b16 %v1186, %v1184
          %v1217 = vpack.c.b16 %v1187, %v1185
          %v1218 = vpack.c.b16 %v1190, %v1188
          %v1219 = vpack.c.b16 %v1191, %v1189
          %v1220 = vpack.c.b16 %v1194, %v1192
          %v1221 = vpack.c.b16 %v1195, %v1193
          %v1222 = vpack.c.b16 %v1198, %v1196
          %v1223 = vpack.c.b16 %v1199, %v1197
          %v1224 = vpack.c.b16 %v1202, %v1200
          %v1225 = vpack.c.b16 %v1203, %v1201
          %v1226 = vpack.c.b16 %v1206, %v1204
          %v1227 = vpack.c.b16 %v1207, %v1205
          %v1228 = vpack.c.b16 %v1210, %v1208
          %v1229 = vpack.c.b16 %v1211, %v1209
          %v1230 = vpack.c.b16 %v1214, %v1212
          %v1231 = vpack.c.b16 %v1215, %v1213
          %1248 = vmatprep.subr.bf16.mxu0 %v1217
          %1249 = vmatpush1.bf16.msra.mxu0 %v1216
          %1250 = vmatprep.subr.bf16.mxu0 %v1219
          %1251 = vmatpush1.bf16.msra.mxu0 %v1218
          %1252 = vmatprep.subr.bf16.mxu0 %v1221
          %1253 = vmatpush1.bf16.msra.mxu0 %v1220
          %1254 = vmatprep.subr.bf16.mxu0 %v1223
          %1255 = vmatpush1.bf16.msra.mxu0 %v1222
          %1256 = vmatprep.subr.bf16.mxu0 %v1225
          %1257 = vmatpush1.bf16.msra.mxu0 %v1224
          %1258 = vmatprep.subr.bf16.mxu0 %v1227
          %1259 = vmatpush1.bf16.msra.mxu0 %v1226
          %1260 = vmatprep.subr.bf16.mxu0 %v1229
          %1261 = vmatpush1.bf16.msra.mxu0 %v1228
          %1262 = vmatprep.subr.bf16.mxu0 %v1231
          %1263 = vmatpush1.bf16.msra.mxu0 %v1230
          %1264 = vmatprep.subr.bf16.mxu0 0
          %1265 = vmatpush1.bf16.msra.mxu0 0
          %1266 = vmatprep.subr.bf16.mxu0 0
          %1267 = vmatpush1.bf16.msra.mxu0 0
          %1268 = vmatprep.subr.bf16.mxu0 0
          %1269 = vmatpush1.bf16.msra.mxu0 0
          %1270 = vmatprep.subr.bf16.mxu0 0
          %1271 = vmatpush1.bf16.msra.mxu0 0
          %1272 = vmatprep.subr.bf16.mxu0 0
          %1273 = vmatpush1.bf16.msra.mxu0 0
          %1274 = vmatprep.subr.bf16.mxu0 0
          %1275 = vmatpush1.bf16.msra.mxu0 0
          %1276 = vmatprep.subr.bf16.mxu0 0
          %1277 = vmatpush1.bf16.msra.mxu0 0
          %1278 = vmatprep.subr.bf16.mxu0 0
          %1279 = vmatpush1.bf16.msra.mxu0 0
          %1280 = vmatprep.mubr.bf16.mxu0 0
          %1281 = vmatmul.mubr.bf16.gmra.mrb[0].mxu0 %v1139
          %v1282 = vpop.f32.mrb[0].mxu0
          %v1283 = vadd.f32 %v1161, %v1282
          %v1284 = vpop.f32.mrb[0].mxu0
          %v1285 = vadd.f32 %v1165, %v1284
          %v1286 = vpop.f32.mrb[0].mxu0
          %v1287 = vpop.f32.mrb[0].mxu0
          %1288 = vdwg.mxu0
          %v1289 = vld [vmem:[#allocation23] sm:$0x3]
          %v1290 = vld [vmem:[#allocation25] sm:$0x3]
          %v1291 = vrot.slane %v1283, 4
          %v1292 = vadd.f32 %v1283, %v1291
          %v1293 = vrot.slane %v1292, 2
          %v1294 = vadd.f32 %v1292, %v1293
          %v1295 = vrot.slane %v1294, 1
          %v1296 = vadd.f32 %v1294, %v1295
          %v1297 = vrot.slane %v1285, 4
          %v1298 = vadd.f32 %v1285, %v1297
          %v1299 = vrot.slane %v1298, 2
          %v1300 = vadd.f32 %v1298, %v1299
          %v1301 = vrot.slane %v1300, 1
          %v1302 = vadd.f32 %v1300, %v1301
          %v1303 = vmul.f32 %v1296, 0.125
          %v1304 = vmul.f32 %v1302, 0.125
          %v1305 = vsub.f32 %v1283, %v1303
          %v1306 = vsub.f32 %v1285, %v1304
          %v1307 = vmul.f32 %v1305, %v1305
          %v1308 = vmul.f32 %v1306, %v1306
          %v1309 = vrot.slane %v1307, 4
          %v1310 = vadd.f32 %v1307, %v1309
          %v1311 = vrot.slane %v1310, 2
          %v1312 = vadd.f32 %v1310, %v1311
          %v1313 = vrot.slane %v1312, 1
          %v1314 = vadd.f32 %v1312, %v1313
          %v1315 = vrot.slane %v1308, 4
          %v1316 = vadd.f32 %v1308, %v1315
          %v1317 = vrot.slane %v1316, 2
          %v1318 = vadd.f32 %v1316, %v1317
          %v1319 = vrot.slane %v1318, 1
          %v1320 = vadd.f32 %v1318, %v1319
          %v1321 = vmul.f32 %v1314, 0.125
          %v1322 = vmul.f32 %v1320, 0.125
          %v1323 = vadd.f32 %v1321, 1e-05
          %v1324 = vadd.f32 %v1322, 1e-05
          %v1325 = vrsqrt.pop %v1323
          %v1326 = vrsqrt.pop %v1324
          %v1327 = vmul.f32 %v1305, %v1325
          %v1328 = vmul.f32 %v1306, %v1326
          %v1330 = vlaneseq
          %v1331 = vshrl.u32 %v1330, 7
          %v1332 = vsub.s32 0, %v1331
          %v1333 = vrot.slane %v1289, %v1332
          %v1334 = vlaneseq
          %v1335 = vshrl.u32 %v1334, 7
          %v1336 = vsub.s32 1, %v1335
          %v1337 = vrot.slane %v1289, %v1336
          %v1340 = vmul.f32 %v1327, %v1333
          %v1341 = vmul.f32 %v1328, %v1337
          %v1343 = vlaneseq
          %v1344 = vshrl.u32 %v1343, 7
          %v1345 = vsub.s32 0, %v1344
          %v1346 = vrot.slane %v1290, %v1345
          %v1347 = vlaneseq
          %v1348 = vshrl.u32 %v1347, 7
          %v1349 = vsub.s32 1, %v1348
          %v1350 = vrot.slane %v1290, %v1349
          %v1353 = vadd.f32 %v1340, %v1346
          %v1354 = vadd.f32 %v1341, %v1350
          %v1355 = vmax.f32 %v1353, 0.0
          %v1356 = vmax.f32 %v1354, 0.0
          %v1357 = vpack.c.bf16 %v1355, %v1355
          %v1358 = vpack.c.bf16 %v1356, %v1356
          %v1361 = vunpack.c.l.b16 %v1357
          %v1362 = vunpack.c.l.b16 %v1358
          %v1363 = vpack.c.b16 %v1362, %v1361
          %1365 = vst [vmem:[%s17] sm:$0xff] %v1363
        $region156: #{generator_forward.2} parent=87 // pred_fallthru
          _
        // Predicated region
        $region157: #{generator_forward.2} parent=87 // pred_check
          %p1366 = pneg %p416
        $region158: #{generator_forward.2} parent=87 // pred_check_branch
          %1368 = sbr.rel (%p1366) target = $region160
        $region159: #{generator_forward.2} parent=87 // pred_region
          _
        $region160: #{generator_forward.2} parent=87 // pred_fallthru
          _
        // Predicated region
        $region161: #{generator_forward.2} parent=87 // pred_check
          %p1369 = pneg %p416
        $region162: #{generator_forward.2} parent=87 // pred_check_branch
          %1371 = sbr.rel (%p1369) target = $region164
        $region163: #{generator_forward.2} parent=87 // pred_region
          _
        $region164: #{generator_forward.2} parent=87 // pred_fallthru
          _
      $region88: #{generator_forward.2} parent=5 // pred_fallthru
        _
      %p1372 = scmp.le.s32.totalorder 2, %s31
      // Predicated region
      $region165: #{generator_forward.2} parent=5 // pred_check
        %p1373 = pneg %p1372
      $region166: #{generator_forward.2} parent=5 // pred_check_branch
        %1375 = sbr.rel (%p1373) target = $region168
      $region167: #{generator_forward.2} parent=5 // pred_region
        %s1376 = ssub.s32 %s31, 2
      $region168: #{generator_forward.2} parent=5 // pred_fallthru
        _
    $region6: #{generator_forward.2} parent=1 // loop_footer
      %s35 = sadd.s32 1, %s31
    $region7: #{generator_forward.2} parent=1 // loop_footer_branch
      %30 = sbr.rel target = $region3
    $region8: #{generator_forward.2} parent=1 // loop_exit
      _
    %1377 = vsyncpa [#allocation4], 1
    %s1378 = scalar_lea.sflag [#allocation4], 1
    %1379 = vsyncpa %s1378, 1
    %1380 = vsyncpa [#allocation6], 1
    %1381 = vsyncpa [#allocation9], 1
    %1382 = vsyncpa [#allocation12], 1
    %1383 = vsyncpa [#allocation15], 1
    %1384 = vsyncpa [#allocation18], 1
    %1385 = vsyncpa [#allocation21], 1
    %1386 = vsyncpa [#allocation24], 1

</llo_original>
